<compile_context>
chip_gen: v7x
topology: tpu7x:2x2x1
jax: 0.10.0
libtpu: 0.0.40
codegen_flags: <defaults>
</compile_context>

<pallas_src>
import functools
import math

import jax
import jax.numpy as jnp
from jax.experimental import pallas as pl
from jax.experimental.pallas import tpu as pltpu


CONFIG = dict(
    vocab_size=100,
    max_pos=16,
    type_vocab=2,
    hidden=32,
    heads=2,
    layers=2,
    intermediate=64,
)


# ----------------------------------------------------------------------------
# Fused whole-model Pallas kernel (one grid step == one batch slab of Bt elems)
# ----------------------------------------------------------------------------

def _bert_kernel(emb_ref,        # (Bt, S, D)   summed embeddings, f32
                 mask_ref,       # (Bt, 1, S)   additive attention mask (0 / -1e9), f32
                 emb_ln_ref,     # (2, D)       embedding LayerNorm gamma/beta
                 qkv_w_ref,      # (L, D, 3D)   fused Q/K/V weights, bf16 (Q pre-scaled)
                 qkv_b_ref,      # (L, 3D)      f32
                 o_w_ref,        # (L, H, Dh, D) bf16 (per-head output projection)
                 o_b_ref,        # (L, D)
                 ln1_ref,        # (L, 2, D)
                 ff1_w_ref,      # (L, D, I)    bf16
                 ff1_b_ref,      # (L, I)
                 ff2_w_ref,      # (L, I, D)    bf16
                 ff2_b_ref,      # (L, D)
                 ln2_ref,        # (L, 2, D)
                 pool_w_ref,     # (D, D)       bf16
                 pool_b_ref,     # (1, D)
                 out_ref,        # (Bt, 1, D)   pooled output
                 *, Bt, S, D, H, L, eps):
    Dh = D // H
    N = Bt * S
    f32 = jnp.float32
    bf16 = jnp.bfloat16

    def layernorm(x, gb):                       # x: (N, D) f32, gb: (2, D)
        mu = jnp.mean(x, axis=-1, keepdims=True)
        var = jnp.mean((x - mu) ** 2, axis=-1, keepdims=True)
        return (x - mu) * jax.lax.rsqrt(var + eps) * gb[0:1, :] + gb[1:2, :]

    def gelu(x):
        # TODO(synk): tanh-approx GELU; HF BERT default is exact erf-GELU (tiny diff).
        return 0.5 * x * (1.0 + jnp.tanh(
            0.7978845608028654 * (x + 0.044715 * x * x * x)))

    # Load small f32 params once.
    qkv_b = qkv_b_ref[...]                      # (L, 3D)
    o_b = o_b_ref[...]                          # (L, D)
    ff1_b = ff1_b_ref[...]                      # (L, I)
    ff2_b = ff2_b_ref[...]                      # (L, D)

    # Hoisted: additive mask broadcast once for the whole kernel.
    mask = jnp.broadcast_to(mask_ref[...], (Bt, S, S))          # (Bt, S, S) f32

    # Embedding LayerNorm; hidden state kept flat (N, D) throughout.
    h = layernorm(emb_ref[...].astype(f32).reshape(N, D), emb_ln_ref[...])

    for l in range(L):
        # --- self-attention: fused QKV projection over the whole slab ---
        h_bf = h.astype(bf16)
        qkv = jnp.dot(h_bf, qkv_w_ref[l],
                      preferred_element_type=f32) + qkv_b[l:l + 1, :]   # (N, 3D)
        qkv_bf = qkv.astype(bf16)               # single cast, reused for q/k/v slices

        o_w_l = o_w_ref[l]                      # (H, Dh, D) bf16
        attn = jnp.zeros((N, D), f32)
        for hh in range(H):
            qh = qkv_bf[:, hh * Dh:(hh + 1) * Dh].reshape(Bt, S, Dh)
            kh = qkv_bf[:, D + hh * Dh:D + (hh + 1) * Dh].reshape(Bt, S, Dh)
            vh = qkv_bf[:, 2 * D + hh * Dh:2 * D + (hh + 1) * Dh].reshape(Bt, S, Dh)
            # 1/sqrt(Dh) already folded into Q weights host-side.
            s = jnp.einsum('bqd,bkd->bqk', qh, kh,
                           preferred_element_type=f32) + mask            # (Bt, S, S)
            s = s - jnp.max(s, axis=-1, keepdims=True)
            p = jnp.exp(s)
            p = p * pl.reciprocal(jnp.sum(p, axis=-1, keepdims=True), approx=True)
            ctx = jnp.einsum('bqk,bkd->bqd', p.astype(bf16), vh,
                             preferred_element_type=f32)                 # (Bt, S, Dh)
            # Per-head accumulation of the output projection (no head concat).
            attn = attn + jnp.dot(ctx.reshape(N, Dh).astype(bf16), o_w_l[hh],
                                  preferred_element_type=f32)
        attn = attn + o_b[l:l + 1, :]

        # fused: residual + LayerNorm
        h = layernorm(h + attn, ln1_ref[l])

        # --- feed-forward: fused GELU, residual, LayerNorm ---
        h_bf = h.astype(bf16)
        ff = gelu(jnp.dot(h_bf, ff1_w_ref[l],
                          preferred_element_type=f32) + ff1_b[l:l + 1, :])
        h = layernorm(
            h + jnp.dot(ff.astype(bf16), ff2_w_ref[l],
                        preferred_element_type=f32) + ff2_b[l:l + 1, :],
            ln2_ref[l])

    # --- pooler: tanh(W_pool @ h[:, 0] + b_pool) over every slab element ---
    cls = h.reshape(Bt, S, D)[:, 0, :]                                   # (Bt, D)
    pooled = jnp.tanh(jnp.dot(cls.astype(bf16), pool_w_ref[...],
                              preferred_element_type=f32) + pool_b_ref[...])
    out_ref[...] = pooled.reshape(Bt, 1, D).astype(out_ref.dtype)


# ----------------------------------------------------------------------------
# Parameters (synthetic, deterministic) and host-side packing
# ----------------------------------------------------------------------------

def init_params(key, cfg):
    D, I, L = cfg["hidden"], cfg["intermediate"], cfg["layers"]
    keys = jax.random.split(key, 8)

    def w(k, shape):
        return 0.02 * jax.random.normal(k, shape, jnp.float32)

    ones_LD = jnp.ones((L, D), jnp.float32)
    zeros_LD = jnp.zeros((L, D), jnp.float32)
    return dict(
        word_emb=w(keys[0], (cfg["vocab_size"], D)),
        pos_emb=w(keys[1], (cfg["max_pos"], D)),
        type_emb=w(keys[2], (cfg["type_vocab"], D)),
        emb_ln=jnp.stack([jnp.ones((D,), jnp.float32),
                          jnp.zeros((D,), jnp.float32)], axis=0),      # (2, D)
        qkv_w=w(keys[3], (L, D, 3 * D)),
        qkv_b=jnp.zeros((L, 3 * D), jnp.float32),
        o_w=w(keys[4], (L, D, D)),
        o_b=jnp.zeros((L, D), jnp.float32),
        ln1=jnp.stack([ones_LD, zeros_LD], axis=1),                    # (L, 2, D)
        ff1_w=w(keys[5], (L, D, I)),
        ff1_b=jnp.zeros((L, I), jnp.float32),
        ff2_w=w(keys[6], (L, I, D)),
        ff2_b=jnp.zeros((L, D), jnp.float32),
        ln2=jnp.stack([ones_LD, zeros_LD], axis=1),                    # (L, 2, D)
        pool_w=w(keys[7], (D, D)),
        pool_b=jnp.zeros((1, D), jnp.float32),
    )


def pack_params(params, cfg):
    """Host-side one-time packing: fold softmax scale into Q weights, pre-cast the
    matmul weights to bf16, and reshape o_w to per-head (L, H, Dh, D) form."""
    D, H, L = cfg["hidden"], cfg["heads"], cfg["layers"]
    Dh = D // H
    scale = 1.0 / math.sqrt(Dh)
    bf16 = jnp.bfloat16

    q_scale = jnp.concatenate([jnp.full((D,), scale, jnp.float32),
                               jnp.ones((2 * D,), jnp.float32)], axis=0)   # (3D,)
    qkv_w = params["qkv_w"] * q_scale[None, None, :]
    qkv_b = params["qkv_b"] * q_scale[None, :]

    packed = dict(params)
    packed.update(
        qkv_w=qkv_w.astype(bf16),
        qkv_b=qkv_b,
        o_w=params["o_w"].reshape(L, H, Dh, D).astype(bf16),
        ff1_w=params["ff1_w"].astype(bf16),
        ff2_w=params["ff2_w"].astype(bf16),
        pool_w=params["pool_w"].astype(bf16),
    )
    return packed


# ----------------------------------------------------------------------------
# Forward wrapper
# ----------------------------------------------------------------------------

def authorship_llm_forward(packed, input_ids, attention_mask, cfg, batch_tile=8):
    """Returns pooled_output = tanh(W_pool @ hidden[:, 0] + b_pool), shape (B, D)."""
    B, S = input_ids.shape
    D, H, L, I = cfg["hidden"], cfg["heads"], cfg["layers"], cfg["intermediate"]
    Dh = D // H

    # Embedding gathers are glue (XLA); everything after runs in one Pallas kernel.
    # TODO(synk): token_type embeddings hard-coded to segment 0 (single-segment input).
    emb = (packed["word_emb"][input_ids]
           + packed["pos_emb"][:S][None, :, :]
           + packed["type_emb"][0][None, None, :])                     # (B, S, D) f32
    mask_add = ((1.0 - attention_mask.astype(jnp.float32)) * -1e9).reshape(B, 1, S)

    # Batch slab per grid step (amortizes per-step overhead on v5e/v6e; slabs still
    # shard across the two TensorCores on v7x via dimension_semantics).
    Bt = min(B, batch_tile)
    n_blocks = pl.cdiv(B, Bt)
    B_pad = n_blocks * Bt
    if B_pad != B:
        pad = B_pad - B
        emb = jnp.pad(emb, ((0, pad), (0, 0), (0, 0)))
        mask_add = jnp.pad(mask_add, ((0, pad), (0, 0), (0, 0)))

    kern = functools.partial(_bert_kernel, Bt=Bt, S=S, D=D, H=H, L=L, eps=1e-12)

    in_specs = [
        pl.BlockSpec((Bt, S, D), lambda b: (b, 0, 0)),          # emb (per-slab block)
        pl.BlockSpec((Bt, 1, S), lambda b: (b, 0, 0)),          # additive mask
        pl.BlockSpec((2, D), lambda b: (0, 0)),                 # emb LN
        pl.BlockSpec((L, D, 3 * D), lambda b: (0, 0, 0)),       # qkv_w (bf16)
        pl.BlockSpec((L, 3 * D), lambda b: (0, 0)),             # qkv_b
        pl.BlockSpec((L, H, Dh, D), lambda b: (0, 0, 0, 0)),    # o_w per-head (bf16)
        pl.BlockSpec((L, D), lambda b: (0, 0)),                 # o_b
        pl.BlockSpec((L, 2, D), lambda b: (0, 0, 0)),           # ln1
        pl.BlockSpec((L, D, I), lambda b: (0, 0, 0)),           # ff1_w (bf16)
        pl.BlockSpec((L, I), lambda b: (0, 0)),                 # ff1_b
        pl.BlockSpec((L, I, D), lambda b: (0, 0, 0)),           # ff2_w (bf16)
        pl.BlockSpec((L, D), lambda b: (0, 0)),                 # ff2_b
        pl.BlockSpec((L, 2, D), lambda b: (0, 0, 0)),           # ln2
        pl.BlockSpec((D, D), lambda b: (0, 0)),                 # pool_w (bf16)
        pl.BlockSpec((1, D), lambda b: (0, 0)),                 # pool_b
    ]

    pooled = pl.pallas_call(
        kern,
        out_shape=jax.ShapeDtypeStruct((B_pad, 1, D), jnp.float32),
        grid=(n_blocks,),
        in_specs=in_specs,
        out_specs=pl.BlockSpec((Bt, 1, D), lambda b: (b, 0, 0)),
        compiler_params=pltpu.CompilerParams(
            dimension_semantics=("parallel",)),                 # v7x: slabs over 2 TCs
    )(emb, mask_add, packed["emb_ln"],
      packed["qkv_w"], packed["qkv_b"], packed["o_w"], packed["o_b"], packed["ln1"],
      packed["ff1_w"], packed["ff1_b"], packed["ff2_w"], packed["ff2_b"], packed["ln2"],
      packed["pool_w"], packed["pool_b"])

    return pooled.reshape(B_pad, D)[:B]


# ----------------------------------------------------------------------------
# Main
# ----------------------------------------------------------------------------

if __name__ == "__main__":
    key = jax.random.PRNGKey(0)
    k_param, k_ids = jax.random.split(key)

    B, S = 2, 8
    params = init_params(k_param, CONFIG)
    packed = pack_params(params, CONFIG)   # one-time host-side bf16 cast / repack

    input_ids = jax.random.randint(k_ids, (B, S), 0, CONFIG["vocab_size"], dtype=jnp.int32)
    attention_mask = jnp.ones((B, S), dtype=jnp.int32)

    forward = jax.jit(lambda p, ids, m: authorship_llm_forward(p, ids, m, CONFIG))
    pooled = jax.block_until_ready(forward(packed, input_ids, attention_mask))

    assert pooled.shape == (B, CONFIG["hidden"])
    assert bool(jnp.all(jnp.isfinite(pooled)))
    print("KERNEL_OK")
</pallas_src>

<mosaic_0001>
module attributes {stable_mosaic.version = 11 : i64} {
  func.func @_bert_kernel(%arg0: i32, %arg1: memref<2x8x32xf32, #tpu.memory_space<vmem>>, %arg2: memref<2x1x8xf32, #tpu.memory_space<vmem>>, %arg3: memref<2x32xf32, #tpu.memory_space<vmem>>, %arg4: memref<2x32x96xbf16, #tpu.memory_space<vmem>>, %arg5: memref<2x96xf32, #tpu.memory_space<vmem>>, %arg6: memref<2x2x16x32xbf16, #tpu.memory_space<vmem>>, %arg7: memref<2x32xf32, #tpu.memory_space<vmem>>, %arg8: memref<2x2x32xf32, #tpu.memory_space<vmem>>, %arg9: memref<2x32x64xbf16, #tpu.memory_space<vmem>>, %arg10: memref<2x64xf32, #tpu.memory_space<vmem>>, %arg11: memref<2x64x32xbf16, #tpu.memory_space<vmem>>, %arg12: memref<2x32xf32, #tpu.memory_space<vmem>>, %arg13: memref<2x2x32xf32, #tpu.memory_space<vmem>>, %arg14: memref<32x32xbf16, #tpu.memory_space<vmem>>, %arg15: memref<1x32xf32, #tpu.memory_space<vmem>>, %arg16: memref<2x1x32xf32, #tpu.memory_space<vmem>>) attributes {dimension_semantics = [#tpu.dimension_semantics<parallel>], iteration_bounds = array<i64: 1>, scalar_prefetch = 0 : i64, scratch_operands = 0 : i64, tpu.core_type = #tpu.core_type<tc>, window_params = [{transform_indices = @transform_0, window_bounds = array<i64: 2, 8, 32>}, {transform_indices = @transform_1, window_bounds = array<i64: 2, 1, 8>}, {pipeline_mode = #tpu.pipeline_mode<synchronous>, transform_indices = @transform_2, window_bounds = array<i64: 2, 32>}, {pipeline_mode = #tpu.pipeline_mode<synchronous>, transform_indices = @transform_3, window_bounds = array<i64: 2, 32, 96>}, {pipeline_mode = #tpu.pipeline_mode<synchronous>, transform_indices = @transform_4, window_bounds = array<i64: 2, 96>}, {pipeline_mode = #tpu.pipeline_mode<synchronous>, transform_indices = @transform_5, window_bounds = array<i64: 2, 2, 16, 32>}, {pipeline_mode = #tpu.pipeline_mode<synchronous>, transform_indices = @transform_6, window_bounds = array<i64: 2, 32>}, {pipeline_mode = #tpu.pipeline_mode<synchronous>, transform_indices = @transform_7, window_bounds = array<i64: 2, 2, 32>}, {pipeline_mode = #tpu.pipeline_mode<synchronous>, transform_indices = @transform_8, window_bounds = array<i64: 2, 32, 64>}, {pipeline_mode = #tpu.pipeline_mode<synchronous>, transform_indices = @transform_9, window_bounds = array<i64: 2, 64>}, {pipeline_mode = #tpu.pipeline_mode<synchronous>, transform_indices = @transform_10, window_bounds = array<i64: 2, 64, 32>}, {pipeline_mode = #tpu.pipeline_mode<synchronous>, transform_indices = @transform_11, window_bounds = array<i64: 2, 32>}, {pipeline_mode = #tpu.pipeline_mode<synchronous>, transform_indices = @transform_12, window_bounds = array<i64: 2, 2, 32>}, {pipeline_mode = #tpu.pipeline_mode<synchronous>, transform_indices = @transform_13, window_bounds = array<i64: 32, 32>}, {pipeline_mode = #tpu.pipeline_mode<synchronous>, transform_indices = @transform_14, window_bounds = array<i64: 1, 32>}, {transform_indices = @transform_15, window_bounds = array<i64: 2, 1, 32>}]} {
    %c0 = arith.constant 0 : index
    %c0_0 = arith.constant 0 : index
    %0 = vector.load %arg5[%c0, %c0_0] : memref<2x96xf32, #tpu.memory_space<vmem>>, vector<2x96xf32>
    %c0_1 = arith.constant 0 : index
    %c0_2 = arith.constant 0 : index
    %1 = vector.load %arg7[%c0_1, %c0_2] : memref<2x32xf32, #tpu.memory_space<vmem>>, vector<2x32xf32>
    %c0_3 = arith.constant 0 : index
    %c0_4 = arith.constant 0 : index
    %2 = vector.load %arg10[%c0_3, %c0_4] : memref<2x64xf32, #tpu.memory_space<vmem>>, vector<2x64xf32>
    %c0_5 = arith.constant 0 : index
    %c0_6 = arith.constant 0 : index
    %3 = vector.load %arg12[%c0_5, %c0_6] : memref<2x32xf32, #tpu.memory_space<vmem>>, vector<2x32xf32>
    %c0_7 = arith.constant 0 : index
    %c0_8 = arith.constant 0 : index
    %c0_9 = arith.constant 0 : index
    %4 = vector.load %arg2[%c0_7, %c0_8, %c0_9] : memref<2x1x8xf32, #tpu.memory_space<vmem>>, vector<2x1x8xf32>
    %5 = vector.shape_cast %4 : vector<2x1x8xf32> to vector<2x1x8xf32>
    %6 = vector.broadcast %5 : vector<2x1x8xf32> to vector<2x8x8xf32>
    %c0_10 = arith.constant 0 : index
    %c0_11 = arith.constant 0 : index
    %c0_12 = arith.constant 0 : index
    %7 = vector.load %arg1[%c0_10, %c0_11, %c0_12] : memref<2x8x32xf32, #tpu.memory_space<vmem>>, vector<2x8x32xf32>
    %8 = vector.shape_cast %7 : vector<2x8x32xf32> to vector<16x32xf32>
    %c0_13 = arith.constant 0 : index
    %c0_14 = arith.constant 0 : index
    %9 = vector.load %arg3[%c0_13, %c0_14] : memref<2x32xf32, #tpu.memory_space<vmem>>, vector<2x32xf32>
    %cst = arith.constant dense<0.000000e+00> : vector<16xf32>
    %10 = vector.multi_reduction <add>, %8, %cst [1] : vector<16x32xf32> to vector<16xf32>
    %11 = vector.shape_cast %10 : vector<16xf32> to vector<16x1xf32>
    %cst_15 = arith.constant 3.200000e+01 : f32
    %12 = vector.broadcast %cst_15 : f32 to vector<16x1xf32>
    %13 = arith.divf %11, %12 : vector<16x1xf32>
    %14 = vector.broadcast %13 : vector<16x1xf32> to vector<16x32xf32>
    %15 = arith.subf %8, %14 : vector<16x32xf32>
    %16 = arith.mulf %15, %15 : vector<16x32xf32>
    %cst_16 = arith.constant dense<0.000000e+00> : vector<16xf32>
    %17 = vector.multi_reduction <add>, %16, %cst_16 [1] : vector<16x32xf32> to vector<16xf32>
    %18 = vector.shape_cast %17 : vector<16xf32> to vector<16x1xf32>
    %cst_17 = arith.constant 3.200000e+01 : f32
    %19 = vector.broadcast %cst_17 : f32 to vector<16x1xf32>
    %20 = arith.divf %18, %19 : vector<16x1xf32>
    %21 = vector.broadcast %13 : vector<16x1xf32> to vector<16x32xf32>
    %22 = arith.subf %8, %21 : vector<16x32xf32>
    %cst_18 = arith.constant 9.99999996E-13 : f32
    %23 = vector.broadcast %cst_18 : f32 to vector<16x1xf32>
    %24 = arith.addf %20, %23 : vector<16x1xf32>
    %25 = math.rsqrt %24 : vector<16x1xf32>
    %26 = vector.broadcast %25 : vector<16x1xf32> to vector<16x32xf32>
    %27 = arith.mulf %22, %26 : vector<16x32xf32>
    %28 = vector.extract_strided_slice %9 {offsets = [0, 0], sizes = [1, 32], strides = [1, 1]} : vector<2x32xf32> to vector<1x32xf32>
    %29 = vector.broadcast %28 : vector<1x32xf32> to vector<16x32xf32>
    %30 = arith.mulf %27, %29 : vector<16x32xf32>
    %31 = vector.extract_strided_slice %9 {offsets = [1, 0], sizes = [1, 32], strides = [1, 1]} : vector<2x32xf32> to vector<1x32xf32>
    %32 = vector.broadcast %31 : vector<1x32xf32> to vector<16x32xf32>
    %33 = arith.addf %30, %32 : vector<16x32xf32>
    %34 = arith.truncf %33 : vector<16x32xf32> to vector<16x32xbf16>
    %c0_19 = arith.constant 0 : index
    %c0_20 = arith.constant 0 : index
    %c0_21 = arith.constant 0 : index
    %35 = vector.load %arg4[%c0_19, %c0_20, %c0_21] : memref<2x32x96xbf16, #tpu.memory_space<vmem>>, vector<1x32x96xbf16>
    %36 = vector.shape_cast %35 : vector<1x32x96xbf16> to vector<32x96xbf16>
    %cst_22 = arith.constant dense<0.000000e+00> : vector<16x96xf32>
    %37 = tpu.matmul %34, %36, %cst_22 {dimension_numbers = #tpu.dot_dimension_numbers<[1], [0], [0], [1], [0, 0, 1, 1], [], []>} : vector<16x32xbf16>, vector<32x96xbf16>, vector<16x96xf32> -> vector<16x96xf32>
    %38 = vector.extract_strided_slice %0 {offsets = [0, 0], sizes = [1, 96], strides = [1, 1]} : vector<2x96xf32> to vector<1x96xf32>
    %39 = vector.broadcast %38 : vector<1x96xf32> to vector<16x96xf32>
    %40 = arith.addf %37, %39 : vector<16x96xf32>
    %41 = arith.truncf %40 : vector<16x96xf32> to vector<16x96xbf16>
    %c0_23 = arith.constant 0 : index
    %c0_24 = arith.constant 0 : index
    %c0_25 = arith.constant 0 : index
    %c0_26 = arith.constant 0 : index
    %42 = vector.load %arg6[%c0_23, %c0_24, %c0_25, %c0_26] : memref<2x2x16x32xbf16, #tpu.memory_space<vmem>>, vector<1x2x16x32xbf16>
    %43 = vector.shape_cast %42 : vector<1x2x16x32xbf16> to vector<2x16x32xbf16>
    %cst_27 = arith.constant 0.000000e+00 : f32
    %44 = vector.broadcast %cst_27 : f32 to vector<16x32xf32>
    %45 = vector.extract_strided_slice %41 {offsets = [0, 0], sizes = [16, 16], strides = [1, 1]} : vector<16x96xbf16> to vector<16x16xbf16>
    %46 = vector.shape_cast %45 : vector<16x16xbf16> to vector<2x8x16xbf16>
    %47 = vector.extract_strided_slice %41 {offsets = [0, 32], sizes = [16, 16], strides = [1, 1]} : vector<16x96xbf16> to vector<16x16xbf16>
    %48 = vector.shape_cast %47 : vector<16x16xbf16> to vector<2x8x16xbf16>
    %49 = vector.extract_strided_slice %41 {offsets = [0, 64], sizes = [16, 16], strides = [1, 1]} : vector<16x96xbf16> to vector<16x16xbf16>
    %50 = vector.shape_cast %49 : vector<16x16xbf16> to vector<2x8x16xbf16>
    "tpu.trace_start"() <{level = 10 : i32, message = "bqd,bkd->bqk"}> : () -> ()
    %cst_28 = arith.constant dense<0.000000e+00> : vector<2x8x8xf32>
    %51 = tpu.matmul %46, %48, %cst_28 {dimension_numbers = #tpu.dot_dimension_numbers<[2], [2], [1], [1], [0, 0, 0, 1, 1, 1], [0], [0]>} : vector<2x8x16xbf16>, vector<2x8x16xbf16>, vector<2x8x8xf32> -> vector<2x8x8xf32>
    "tpu.trace_stop"() : () -> ()
    %52 = arith.addf %51, %6 : vector<2x8x8xf32>
    %cst_29 = arith.constant dense<0xFF800000> : vector<2x8xf32>
    %53 = vector.multi_reduction <maximumf>, %52, %cst_29 [2] : vector<2x8x8xf32> to vector<2x8xf32>
    %54 = vector.shape_cast %53 : vector<2x8xf32> to vector<2x8x1xf32>
    %55 = vector.broadcast %54 : vector<2x8x1xf32> to vector<2x8x8xf32>
    %56 = arith.subf %52, %55 : vector<2x8x8xf32>
    %57 = math.exp %56 : vector<2x8x8xf32>
    %cst_30 = arith.constant dense<0.000000e+00> : vector<2x8xf32>
    %58 = vector.multi_reduction <add>, %57, %cst_30 [2] : vector<2x8x8xf32> to vector<2x8xf32>
    %59 = vector.shape_cast %58 : vector<2x8xf32> to vector<2x8x1xf32>
    %60 = tpu.reciprocal %59 {approx = true} : vector<2x8x1xf32> -> vector<2x8x1xf32>
    %61 = vector.broadcast %60 : vector<2x8x1xf32> to vector<2x8x8xf32>
    %62 = arith.mulf %57, %61 : vector<2x8x8xf32>
    %63 = arith.truncf %62 : vector<2x8x8xf32> to vector<2x8x8xbf16>
    "tpu.trace_start"() <{level = 10 : i32, message = "bqk,bkd->bqd"}> : () -> ()
    %cst_31 = arith.constant dense<0.000000e+00> : vector<2x8x16xf32>
    %64 = tpu.matmul %63, %50, %cst_31 {dimension_numbers = #tpu.dot_dimension_numbers<[2], [1], [1], [2], [0, 0, 0, 1, 1, 2], [0], [0]>} : vector<2x8x8xbf16>, vector<2x8x16xbf16>, vector<2x8x16xf32> -> vector<2x8x16xf32>
    "tpu.trace_stop"() : () -> ()
    %65 = vector.shape_cast %64 : vector<2x8x16xf32> to vector<16x16xf32>
    %66 = arith.truncf %65 : vector<16x16xf32> to vector<16x16xbf16>
    %67 = vector.extract_strided_slice %43 {offsets = [0, 0, 0], sizes = [1, 16, 32], strides = [1, 1, 1]} : vector<2x16x32xbf16> to vector<1x16x32xbf16>
    %68 = vector.shape_cast %67 : vector<1x16x32xbf16> to vector<16x32xbf16>
    %cst_32 = arith.constant dense<0.000000e+00> : vector<16x32xf32>
    %69 = tpu.matmul %66, %68, %cst_32 {dimension_numbers = #tpu.dot_dimension_numbers<[1], [0], [0], [1], [0, 0, 1, 1], [], []>} : vector<16x16xbf16>, vector<16x32xbf16>, vector<16x32xf32> -> vector<16x32xf32>
    %70 = arith.addf %44, %69 : vector<16x32xf32>
    %71 = vector.extract_strided_slice %41 {offsets = [0, 16], sizes = [16, 16], strides = [1, 1]} : vector<16x96xbf16> to vector<16x16xbf16>
    %72 = vector.shape_cast %71 : vector<16x16xbf16> to vector<2x8x16xbf16>
    %73 = vector.extract_strided_slice %41 {offsets = [0, 48], sizes = [16, 16], strides = [1, 1]} : vector<16x96xbf16> to vector<16x16xbf16>
    %74 = vector.shape_cast %73 : vector<16x16xbf16> to vector<2x8x16xbf16>
    %75 = vector.extract_strided_slice %41 {offsets = [0, 80], sizes = [16, 16], strides = [1, 1]} : vector<16x96xbf16> to vector<16x16xbf16>
    %76 = vector.shape_cast %75 : vector<16x16xbf16> to vector<2x8x16xbf16>
    "tpu.trace_start"() <{level = 10 : i32, message = "bqd,bkd->bqk"}> : () -> ()
    %cst_33 = arith.constant dense<0.000000e+00> : vector<2x8x8xf32>
    %77 = tpu.matmul %72, %74, %cst_33 {dimension_numbers = #tpu.dot_dimension_numbers<[2], [2], [1], [1], [0, 0, 0, 1, 1, 1], [0], [0]>} : vector<2x8x16xbf16>, vector<2x8x16xbf16>, vector<2x8x8xf32> -> vector<2x8x8xf32>
    "tpu.trace_stop"() : () -> ()
    %78 = arith.addf %77, %6 : vector<2x8x8xf32>
    %cst_34 = arith.constant dense<0xFF800000> : vector<2x8xf32>
    %79 = vector.multi_reduction <maximumf>, %78, %cst_34 [2] : vector<2x8x8xf32> to vector<2x8xf32>
    %80 = vector.shape_cast %79 : vector<2x8xf32> to vector<2x8x1xf32>
    %81 = vector.broadcast %80 : vector<2x8x1xf32> to vector<2x8x8xf32>
    %82 = arith.subf %78, %81 : vector<2x8x8xf32>
    %83 = math.exp %82 : vector<2x8x8xf32>
    %cst_35 = arith.constant dense<0.000000e+00> : vector<2x8xf32>
    %84 = vector.multi_reduction <add>, %83, %cst_35 [2] : vector<2x8x8xf32> to vector<2x8xf32>
    %85 = vector.shape_cast %84 : vector<2x8xf32> to vector<2x8x1xf32>
    %86 = tpu.reciprocal %85 {approx = true} : vector<2x8x1xf32> -> vector<2x8x1xf32>
    %87 = vector.broadcast %86 : vector<2x8x1xf32> to vector<2x8x8xf32>
    %88 = arith.mulf %83, %87 : vector<2x8x8xf32>
    %89 = arith.truncf %88 : vector<2x8x8xf32> to vector<2x8x8xbf16>
    "tpu.trace_start"() <{level = 10 : i32, message = "bqk,bkd->bqd"}> : () -> ()
    %cst_36 = arith.constant dense<0.000000e+00> : vector<2x8x16xf32>
    %90 = tpu.matmul %89, %76, %cst_36 {dimension_numbers = #tpu.dot_dimension_numbers<[2], [1], [1], [2], [0, 0, 0, 1, 1, 2], [0], [0]>} : vector<2x8x8xbf16>, vector<2x8x16xbf16>, vector<2x8x16xf32> -> vector<2x8x16xf32>
    "tpu.trace_stop"() : () -> ()
    %91 = vector.shape_cast %90 : vector<2x8x16xf32> to vector<16x16xf32>
    %92 = arith.truncf %91 : vector<16x16xf32> to vector<16x16xbf16>
    %93 = vector.extract_strided_slice %43 {offsets = [1, 0, 0], sizes = [1, 16, 32], strides = [1, 1, 1]} : vector<2x16x32xbf16> to vector<1x16x32xbf16>
    %94 = vector.shape_cast %93 : vector<1x16x32xbf16> to vector<16x32xbf16>
    %cst_37 = arith.constant dense<0.000000e+00> : vector<16x32xf32>
    %95 = tpu.matmul %92, %94, %cst_37 {dimension_numbers = #tpu.dot_dimension_numbers<[1], [0], [0], [1], [0, 0, 1, 1], [], []>} : vector<16x16xbf16>, vector<16x32xbf16>, vector<16x32xf32> -> vector<16x32xf32>
    %96 = arith.addf %70, %95 : vector<16x32xf32>
    %97 = vector.extract_strided_slice %1 {offsets = [0, 0], sizes = [1, 32], strides = [1, 1]} : vector<2x32xf32> to vector<1x32xf32>
    %98 = vector.broadcast %97 : vector<1x32xf32> to vector<16x32xf32>
    %99 = arith.addf %96, %98 : vector<16x32xf32>
    %100 = arith.addf %33, %99 : vector<16x32xf32>
    %c0_38 = arith.constant 0 : index
    %c0_39 = arith.constant 0 : index
    %c0_40 = arith.constant 0 : index
    %101 = vector.load %arg8[%c0_38, %c0_39, %c0_40] : memref<2x2x32xf32, #tpu.memory_space<vmem>>, vector<1x2x32xf32>
    %102 = vector.shape_cast %101 : vector<1x2x32xf32> to vector<2x32xf32>
    %cst_41 = arith.constant dense<0.000000e+00> : vector<16xf32>
    %103 = vector.multi_reduction <add>, %100, %cst_41 [1] : vector<16x32xf32> to vector<16xf32>
    %104 = vector.shape_cast %103 : vector<16xf32> to vector<16x1xf32>
    %cst_42 = arith.constant 3.200000e+01 : f32
    %105 = vector.broadcast %cst_42 : f32 to vector<16x1xf32>
    %106 = arith.divf %104, %105 : vector<16x1xf32>
    %107 = vector.broadcast %106 : vector<16x1xf32> to vector<16x32xf32>
    %108 = arith.subf %100, %107 : vector<16x32xf32>
    %109 = arith.mulf %108, %108 : vector<16x32xf32>
    %cst_43 = arith.constant dense<0.000000e+00> : vector<16xf32>
    %110 = vector.multi_reduction <add>, %109, %cst_43 [1] : vector<16x32xf32> to vector<16xf32>
    %111 = vector.shape_cast %110 : vector<16xf32> to vector<16x1xf32>
    %cst_44 = arith.constant 3.200000e+01 : f32
    %112 = vector.broadcast %cst_44 : f32 to vector<16x1xf32>
    %113 = arith.divf %111, %112 : vector<16x1xf32>
    %114 = vector.broadcast %106 : vector<16x1xf32> to vector<16x32xf32>
    %115 = arith.subf %100, %114 : vector<16x32xf32>
    %cst_45 = arith.constant 9.99999996E-13 : f32
    %116 = vector.broadcast %cst_45 : f32 to vector<16x1xf32>
    %117 = arith.addf %113, %116 : vector<16x1xf32>
    %118 = math.rsqrt %117 : vector<16x1xf32>
    %119 = vector.broadcast %118 : vector<16x1xf32> to vector<16x32xf32>
    %120 = arith.mulf %115, %119 : vector<16x32xf32>
    %121 = vector.extract_strided_slice %102 {offsets = [0, 0], sizes = [1, 32], strides = [1, 1]} : vector<2x32xf32> to vector<1x32xf32>
    %122 = vector.broadcast %121 : vector<1x32xf32> to vector<16x32xf32>
    %123 = arith.mulf %120, %122 : vector<16x32xf32>
    %124 = vector.extract_strided_slice %102 {offsets = [1, 0], sizes = [1, 32], strides = [1, 1]} : vector<2x32xf32> to vector<1x32xf32>
    %125 = vector.broadcast %124 : vector<1x32xf32> to vector<16x32xf32>
    %126 = arith.addf %123, %125 : vector<16x32xf32>
    %127 = arith.truncf %126 : vector<16x32xf32> to vector<16x32xbf16>
    %c0_46 = arith.constant 0 : index
    %c0_47 = arith.constant 0 : index
    %c0_48 = arith.constant 0 : index
    %128 = vector.load %arg9[%c0_46, %c0_47, %c0_48] : memref<2x32x64xbf16, #tpu.memory_space<vmem>>, vector<1x32x64xbf16>
    %129 = vector.shape_cast %128 : vector<1x32x64xbf16> to vector<32x64xbf16>
    %cst_49 = arith.constant dense<0.000000e+00> : vector<16x64xf32>
    %130 = tpu.matmul %127, %129, %cst_49 {dimension_numbers = #tpu.dot_dimension_numbers<[1], [0], [0], [1], [0, 0, 1, 1], [], []>} : vector<16x32xbf16>, vector<32x64xbf16>, vector<16x64xf32> -> vector<16x64xf32>
    %131 = vector.extract_strided_slice %2 {offsets = [0, 0], sizes = [1, 64], strides = [1, 1]} : vector<2x64xf32> to vector<1x64xf32>
    %132 = vector.broadcast %131 : vector<1x64xf32> to vector<16x64xf32>
    %133 = arith.addf %130, %132 : vector<16x64xf32>
    %cst_50 = arith.constant 5.000000e-01 : f32
    %134 = vector.broadcast %cst_50 : f32 to vector<16x64xf32>
    %135 = arith.mulf %134, %133 : vector<16x64xf32>
    %cst_51 = arith.constant 4.471500e-02 : f32
    %136 = vector.broadcast %cst_51 : f32 to vector<16x64xf32>
    %137 = arith.mulf %136, %133 : vector<16x64xf32>
    %138 = arith.mulf %137, %133 : vector<16x64xf32>
    %139 = arith.mulf %138, %133 : vector<16x64xf32>
    %140 = arith.addf %133, %139 : vector<16x64xf32>
    %cst_52 = arith.constant 0.797884583 : f32
    %141 = vector.broadcast %cst_52 : f32 to vector<16x64xf32>
    %142 = arith.mulf %141, %140 : vector<16x64xf32>
    %143 = math.tanh %142 : vector<16x64xf32>
    %cst_53 = arith.constant 1.000000e+00 : f32
    %144 = vector.broadcast %cst_53 : f32 to vector<16x64xf32>
    %145 = arith.addf %144, %143 : vector<16x64xf32>
    %146 = arith.mulf %135, %145 : vector<16x64xf32>
    %147 = arith.truncf %146 : vector<16x64xf32> to vector<16x64xbf16>
    %c0_54 = arith.constant 0 : index
    %c0_55 = arith.constant 0 : index
    %c0_56 = arith.constant 0 : index
    %148 = vector.load %arg11[%c0_54, %c0_55, %c0_56] : memref<2x64x32xbf16, #tpu.memory_space<vmem>>, vector<1x64x32xbf16>
    %149 = vector.shape_cast %148 : vector<1x64x32xbf16> to vector<64x32xbf16>
    %cst_57 = arith.constant dense<0.000000e+00> : vector<16x32xf32>
    %150 = tpu.matmul %147, %149, %cst_57 {dimension_numbers = #tpu.dot_dimension_numbers<[1], [0], [0], [1], [0, 0, 1, 1], [], []>} : vector<16x64xbf16>, vector<64x32xbf16>, vector<16x32xf32> -> vector<16x32xf32>
    %151 = arith.addf %126, %150 : vector<16x32xf32>
    %152 = vector.extract_strided_slice %3 {offsets = [0, 0], sizes = [1, 32], strides = [1, 1]} : vector<2x32xf32> to vector<1x32xf32>
    %153 = vector.broadcast %152 : vector<1x32xf32> to vector<16x32xf32>
    %154 = arith.addf %151, %153 : vector<16x32xf32>
    %c0_58 = arith.constant 0 : index
    %c0_59 = arith.constant 0 : index
    %c0_60 = arith.constant 0 : index
    %155 = vector.load %arg13[%c0_58, %c0_59, %c0_60] : memref<2x2x32xf32, #tpu.memory_space<vmem>>, vector<1x2x32xf32>
    %156 = vector.shape_cast %155 : vector<1x2x32xf32> to vector<2x32xf32>
    %cst_61 = arith.constant dense<0.000000e+00> : vector<16xf32>
    %157 = vector.multi_reduction <add>, %154, %cst_61 [1] : vector<16x32xf32> to vector<16xf32>
    %158 = vector.shape_cast %157 : vector<16xf32> to vector<16x1xf32>
    %cst_62 = arith.constant 3.200000e+01 : f32
    %159 = vector.broadcast %cst_62 : f32 to vector<16x1xf32>
    %160 = arith.divf %158, %159 : vector<16x1xf32>
    %161 = vector.broadcast %160 : vector<16x1xf32> to vector<16x32xf32>
    %162 = arith.subf %154, %161 : vector<16x32xf32>
    %163 = arith.mulf %162, %162 : vector<16x32xf32>
    %cst_63 = arith.constant dense<0.000000e+00> : vector<16xf32>
    %164 = vector.multi_reduction <add>, %163, %cst_63 [1] : vector<16x32xf32> to vector<16xf32>
    %165 = vector.shape_cast %164 : vector<16xf32> to vector<16x1xf32>
    %cst_64 = arith.constant 3.200000e+01 : f32
    %166 = vector.broadcast %cst_64 : f32 to vector<16x1xf32>
    %167 = arith.divf %165, %166 : vector<16x1xf32>
    %168 = vector.broadcast %160 : vector<16x1xf32> to vector<16x32xf32>
    %169 = arith.subf %154, %168 : vector<16x32xf32>
    %cst_65 = arith.constant 9.99999996E-13 : f32
    %170 = vector.broadcast %cst_65 : f32 to vector<16x1xf32>
    %171 = arith.addf %167, %170 : vector<16x1xf32>
    %172 = math.rsqrt %171 : vector<16x1xf32>
    %173 = vector.broadcast %172 : vector<16x1xf32> to vector<16x32xf32>
    %174 = arith.mulf %169, %173 : vector<16x32xf32>
    %175 = vector.extract_strided_slice %156 {offsets = [0, 0], sizes = [1, 32], strides = [1, 1]} : vector<2x32xf32> to vector<1x32xf32>
    %176 = vector.broadcast %175 : vector<1x32xf32> to vector<16x32xf32>
    %177 = arith.mulf %174, %176 : vector<16x32xf32>
    %178 = vector.extract_strided_slice %156 {offsets = [1, 0], sizes = [1, 32], strides = [1, 1]} : vector<2x32xf32> to vector<1x32xf32>
    %179 = vector.broadcast %178 : vector<1x32xf32> to vector<16x32xf32>
    %180 = arith.addf %177, %179 : vector<16x32xf32>
    %181 = arith.truncf %180 : vector<16x32xf32> to vector<16x32xbf16>
    %c1 = arith.constant 1 : index
    %c0_66 = arith.constant 0 : index
    %c0_67 = arith.constant 0 : index
    %182 = vector.load %arg4[%c1, %c0_66, %c0_67] : memref<2x32x96xbf16, #tpu.memory_space<vmem>>, vector<1x32x96xbf16>
    %183 = vector.shape_cast %182 : vector<1x32x96xbf16> to vector<32x96xbf16>
    %cst_68 = arith.constant dense<0.000000e+00> : vector<16x96xf32>
    %184 = tpu.matmul %181, %183, %cst_68 {dimension_numbers = #tpu.dot_dimension_numbers<[1], [0], [0], [1], [0, 0, 1, 1], [], []>} : vector<16x32xbf16>, vector<32x96xbf16>, vector<16x96xf32> -> vector<16x96xf32>
    %185 = vector.extract_strided_slice %0 {offsets = [1, 0], sizes = [1, 96], strides = [1, 1]} : vector<2x96xf32> to vector<1x96xf32>
    %186 = vector.broadcast %185 : vector<1x96xf32> to vector<16x96xf32>
    %187 = arith.addf %184, %186 : vector<16x96xf32>
    %188 = arith.truncf %187 : vector<16x96xf32> to vector<16x96xbf16>
    %c1_69 = arith.constant 1 : index
    %c0_70 = arith.constant 0 : index
    %c0_71 = arith.constant 0 : index
    %c0_72 = arith.constant 0 : index
    %189 = vector.load %arg6[%c1_69, %c0_70, %c0_71, %c0_72] : memref<2x2x16x32xbf16, #tpu.memory_space<vmem>>, vector<1x2x16x32xbf16>
    %190 = vector.shape_cast %189 : vector<1x2x16x32xbf16> to vector<2x16x32xbf16>
    %cst_73 = arith.constant 0.000000e+00 : f32
    %191 = vector.broadcast %cst_73 : f32 to vector<16x32xf32>
    %192 = vector.extract_strided_slice %188 {offsets = [0, 0], sizes = [16, 16], strides = [1, 1]} : vector<16x96xbf16> to vector<16x16xbf16>
    %193 = vector.shape_cast %192 : vector<16x16xbf16> to vector<2x8x16xbf16>
    %194 = vector.extract_strided_slice %188 {offsets = [0, 32], sizes = [16, 16], strides = [1, 1]} : vector<16x96xbf16> to vector<16x16xbf16>
    %195 = vector.shape_cast %194 : vector<16x16xbf16> to vector<2x8x16xbf16>
    %196 = vector.extract_strided_slice %188 {offsets = [0, 64], sizes = [16, 16], strides = [1, 1]} : vector<16x96xbf16> to vector<16x16xbf16>
    %197 = vector.shape_cast %196 : vector<16x16xbf16> to vector<2x8x16xbf16>
    "tpu.trace_start"() <{level = 10 : i32, message = "bqd,bkd->bqk"}> : () -> ()
    %cst_74 = arith.constant dense<0.000000e+00> : vector<2x8x8xf32>
    %198 = tpu.matmul %193, %195, %cst_74 {dimension_numbers = #tpu.dot_dimension_numbers<[2], [2], [1], [1], [0, 0, 0, 1, 1, 1], [0], [0]>} : vector<2x8x16xbf16>, vector<2x8x16xbf16>, vector<2x8x8xf32> -> vector<2x8x8xf32>
    "tpu.trace_stop"() : () -> ()
    %199 = arith.addf %198, %6 : vector<2x8x8xf32>
    %cst_75 = arith.constant dense<0xFF800000> : vector<2x8xf32>
    %200 = vector.multi_reduction <maximumf>, %199, %cst_75 [2] : vector<2x8x8xf32> to vector<2x8xf32>
    %201 = vector.shape_cast %200 : vector<2x8xf32> to vector<2x8x1xf32>
    %202 = vector.broadcast %201 : vector<2x8x1xf32> to vector<2x8x8xf32>
    %203 = arith.subf %199, %202 : vector<2x8x8xf32>
    %204 = math.exp %203 : vector<2x8x8xf32>
    %cst_76 = arith.constant dense<0.000000e+00> : vector<2x8xf32>
    %205 = vector.multi_reduction <add>, %204, %cst_76 [2] : vector<2x8x8xf32> to vector<2x8xf32>
    %206 = vector.shape_cast %205 : vector<2x8xf32> to vector<2x8x1xf32>
    %207 = tpu.reciprocal %206 {approx = true} : vector<2x8x1xf32> -> vector<2x8x1xf32>
    %208 = vector.broadcast %207 : vector<2x8x1xf32> to vector<2x8x8xf32>
    %209 = arith.mulf %204, %208 : vector<2x8x8xf32>
    %210 = arith.truncf %209 : vector<2x8x8xf32> to vector<2x8x8xbf16>
    "tpu.trace_start"() <{level = 10 : i32, message = "bqk,bkd->bqd"}> : () -> ()
    %cst_77 = arith.constant dense<0.000000e+00> : vector<2x8x16xf32>
    %211 = tpu.matmul %210, %197, %cst_77 {dimension_numbers = #tpu.dot_dimension_numbers<[2], [1], [1], [2], [0, 0, 0, 1, 1, 2], [0], [0]>} : vector<2x8x8xbf16>, vector<2x8x16xbf16>, vector<2x8x16xf32> -> vector<2x8x16xf32>
    "tpu.trace_stop"() : () -> ()
    %212 = vector.shape_cast %211 : vector<2x8x16xf32> to vector<16x16xf32>
    %213 = arith.truncf %212 : vector<16x16xf32> to vector<16x16xbf16>
    %214 = vector.extract_strided_slice %190 {offsets = [0, 0, 0], sizes = [1, 16, 32], strides = [1, 1, 1]} : vector<2x16x32xbf16> to vector<1x16x32xbf16>
    %215 = vector.shape_cast %214 : vector<1x16x32xbf16> to vector<16x32xbf16>
    %cst_78 = arith.constant dense<0.000000e+00> : vector<16x32xf32>
    %216 = tpu.matmul %213, %215, %cst_78 {dimension_numbers = #tpu.dot_dimension_numbers<[1], [0], [0], [1], [0, 0, 1, 1], [], []>} : vector<16x16xbf16>, vector<16x32xbf16>, vector<16x32xf32> -> vector<16x32xf32>
    %217 = arith.addf %191, %216 : vector<16x32xf32>
    %218 = vector.extract_strided_slice %188 {offsets = [0, 16], sizes = [16, 16], strides = [1, 1]} : vector<16x96xbf16> to vector<16x16xbf16>
    %219 = vector.shape_cast %218 : vector<16x16xbf16> to vector<2x8x16xbf16>
    %220 = vector.extract_strided_slice %188 {offsets = [0, 48], sizes = [16, 16], strides = [1, 1]} : vector<16x96xbf16> to vector<16x16xbf16>
    %221 = vector.shape_cast %220 : vector<16x16xbf16> to vector<2x8x16xbf16>
    %222 = vector.extract_strided_slice %188 {offsets = [0, 80], sizes = [16, 16], strides = [1, 1]} : vector<16x96xbf16> to vector<16x16xbf16>
    %223 = vector.shape_cast %222 : vector<16x16xbf16> to vector<2x8x16xbf16>
    "tpu.trace_start"() <{level = 10 : i32, message = "bqd,bkd->bqk"}> : () -> ()
    %cst_79 = arith.constant dense<0.000000e+00> : vector<2x8x8xf32>
    %224 = tpu.matmul %219, %221, %cst_79 {dimension_numbers = #tpu.dot_dimension_numbers<[2], [2], [1], [1], [0, 0, 0, 1, 1, 1], [0], [0]>} : vector<2x8x16xbf16>, vector<2x8x16xbf16>, vector<2x8x8xf32> -> vector<2x8x8xf32>
    "tpu.trace_stop"() : () -> ()
    %225 = arith.addf %224, %6 : vector<2x8x8xf32>
    %cst_80 = arith.constant dense<0xFF800000> : vector<2x8xf32>
    %226 = vector.multi_reduction <maximumf>, %225, %cst_80 [2] : vector<2x8x8xf32> to vector<2x8xf32>
    %227 = vector.shape_cast %226 : vector<2x8xf32> to vector<2x8x1xf32>
    %228 = vector.broadcast %227 : vector<2x8x1xf32> to vector<2x8x8xf32>
    %229 = arith.subf %225, %228 : vector<2x8x8xf32>
    %230 = math.exp %229 : vector<2x8x8xf32>
    %cst_81 = arith.constant dense<0.000000e+00> : vector<2x8xf32>
    %231 = vector.multi_reduction <add>, %230, %cst_81 [2] : vector<2x8x8xf32> to vector<2x8xf32>
    %232 = vector.shape_cast %231 : vector<2x8xf32> to vector<2x8x1xf32>
    %233 = tpu.reciprocal %232 {approx = true} : vector<2x8x1xf32> -> vector<2x8x1xf32>
    %234 = vector.broadcast %233 : vector<2x8x1xf32> to vector<2x8x8xf32>
    %235 = arith.mulf %230, %234 : vector<2x8x8xf32>
    %236 = arith.truncf %235 : vector<2x8x8xf32> to vector<2x8x8xbf16>
    "tpu.trace_start"() <{level = 10 : i32, message = "bqk,bkd->bqd"}> : () -> ()
    %cst_82 = arith.constant dense<0.000000e+00> : vector<2x8x16xf32>
    %237 = tpu.matmul %236, %223, %cst_82 {dimension_numbers = #tpu.dot_dimension_numbers<[2], [1], [1], [2], [0, 0, 0, 1, 1, 2], [0], [0]>} : vector<2x8x8xbf16>, vector<2x8x16xbf16>, vector<2x8x16xf32> -> vector<2x8x16xf32>
    "tpu.trace_stop"() : () -> ()
    %238 = vector.shape_cast %237 : vector<2x8x16xf32> to vector<16x16xf32>
    %239 = arith.truncf %238 : vector<16x16xf32> to vector<16x16xbf16>
    %240 = vector.extract_strided_slice %190 {offsets = [1, 0, 0], sizes = [1, 16, 32], strides = [1, 1, 1]} : vector<2x16x32xbf16> to vector<1x16x32xbf16>
    %241 = vector.shape_cast %240 : vector<1x16x32xbf16> to vector<16x32xbf16>
    %cst_83 = arith.constant dense<0.000000e+00> : vector<16x32xf32>
    %242 = tpu.matmul %239, %241, %cst_83 {dimension_numbers = #tpu.dot_dimension_numbers<[1], [0], [0], [1], [0, 0, 1, 1], [], []>} : vector<16x16xbf16>, vector<16x32xbf16>, vector<16x32xf32> -> vector<16x32xf32>
    %243 = arith.addf %217, %242 : vector<16x32xf32>
    %244 = vector.extract_strided_slice %1 {offsets = [1, 0], sizes = [1, 32], strides = [1, 1]} : vector<2x32xf32> to vector<1x32xf32>
    %245 = vector.broadcast %244 : vector<1x32xf32> to vector<16x32xf32>
    %246 = arith.addf %243, %245 : vector<16x32xf32>
    %247 = arith.addf %180, %246 : vector<16x32xf32>
    %c1_84 = arith.constant 1 : index
    %c0_85 = arith.constant 0 : index
    %c0_86 = arith.constant 0 : index
    %248 = vector.load %arg8[%c1_84, %c0_85, %c0_86] : memref<2x2x32xf32, #tpu.memory_space<vmem>>, vector<1x2x32xf32>
    %249 = vector.shape_cast %248 : vector<1x2x32xf32> to vector<2x32xf32>
    %cst_87 = arith.constant dense<0.000000e+00> : vector<16xf32>
    %250 = vector.multi_reduction <add>, %247, %cst_87 [1] : vector<16x32xf32> to vector<16xf32>
    %251 = vector.shape_cast %250 : vector<16xf32> to vector<16x1xf32>
    %cst_88 = arith.constant 3.200000e+01 : f32
    %252 = vector.broadcast %cst_88 : f32 to vector<16x1xf32>
    %253 = arith.divf %251, %252 : vector<16x1xf32>
    %254 = vector.broadcast %253 : vector<16x1xf32> to vector<16x32xf32>
    %255 = arith.subf %247, %254 : vector<16x32xf32>
    %256 = arith.mulf %255, %255 : vector<16x32xf32>
    %cst_89 = arith.constant dense<0.000000e+00> : vector<16xf32>
    %257 = vector.multi_reduction <add>, %256, %cst_89 [1] : vector<16x32xf32> to vector<16xf32>
    %258 = vector.shape_cast %257 : vector<16xf32> to vector<16x1xf32>
    %cst_90 = arith.constant 3.200000e+01 : f32
    %259 = vector.broadcast %cst_90 : f32 to vector<16x1xf32>
    %260 = arith.divf %258, %259 : vector<16x1xf32>
    %261 = vector.broadcast %253 : vector<16x1xf32> to vector<16x32xf32>
    %262 = arith.subf %247, %261 : vector<16x32xf32>
    %cst_91 = arith.constant 9.99999996E-13 : f32
    %263 = vector.broadcast %cst_91 : f32 to vector<16x1xf32>
    %264 = arith.addf %260, %263 : vector<16x1xf32>
    %265 = math.rsqrt %264 : vector<16x1xf32>
    %266 = vector.broadcast %265 : vector<16x1xf32> to vector<16x32xf32>
    %267 = arith.mulf %262, %266 : vector<16x32xf32>
    %268 = vector.extract_strided_slice %249 {offsets = [0, 0], sizes = [1, 32], strides = [1, 1]} : vector<2x32xf32> to vector<1x32xf32>
    %269 = vector.broadcast %268 : vector<1x32xf32> to vector<16x32xf32>
    %270 = arith.mulf %267, %269 : vector<16x32xf32>
    %271 = vector.extract_strided_slice %249 {offsets = [1, 0], sizes = [1, 32], strides = [1, 1]} : vector<2x32xf32> to vector<1x32xf32>
    %272 = vector.broadcast %271 : vector<1x32xf32> to vector<16x32xf32>
    %273 = arith.addf %270, %272 : vector<16x32xf32>
    %274 = arith.truncf %273 : vector<16x32xf32> to vector<16x32xbf16>
    %c1_92 = arith.constant 1 : index
    %c0_93 = arith.constant 0 : index
    %c0_94 = arith.constant 0 : index
    %275 = vector.load %arg9[%c1_92, %c0_93, %c0_94] : memref<2x32x64xbf16, #tpu.memory_space<vmem>>, vector<1x32x64xbf16>
    %276 = vector.shape_cast %275 : vector<1x32x64xbf16> to vector<32x64xbf16>
    %cst_95 = arith.constant dense<0.000000e+00> : vector<16x64xf32>
    %277 = tpu.matmul %274, %276, %cst_95 {dimension_numbers = #tpu.dot_dimension_numbers<[1], [0], [0], [1], [0, 0, 1, 1], [], []>} : vector<16x32xbf16>, vector<32x64xbf16>, vector<16x64xf32> -> vector<16x64xf32>
    %278 = vector.extract_strided_slice %2 {offsets = [1, 0], sizes = [1, 64], strides = [1, 1]} : vector<2x64xf32> to vector<1x64xf32>
    %279 = vector.broadcast %278 : vector<1x64xf32> to vector<16x64xf32>
    %280 = arith.addf %277, %279 : vector<16x64xf32>
    %cst_96 = arith.constant 5.000000e-01 : f32
    %281 = vector.broadcast %cst_96 : f32 to vector<16x64xf32>
    %282 = arith.mulf %281, %280 : vector<16x64xf32>
    %cst_97 = arith.constant 4.471500e-02 : f32
    %283 = vector.broadcast %cst_97 : f32 to vector<16x64xf32>
    %284 = arith.mulf %283, %280 : vector<16x64xf32>
    %285 = arith.mulf %284, %280 : vector<16x64xf32>
    %286 = arith.mulf %285, %280 : vector<16x64xf32>
    %287 = arith.addf %280, %286 : vector<16x64xf32>
    %cst_98 = arith.constant 0.797884583 : f32
    %288 = vector.broadcast %cst_98 : f32 to vector<16x64xf32>
    %289 = arith.mulf %288, %287 : vector<16x64xf32>
    %290 = math.tanh %289 : vector<16x64xf32>
    %cst_99 = arith.constant 1.000000e+00 : f32
    %291 = vector.broadcast %cst_99 : f32 to vector<16x64xf32>
    %292 = arith.addf %291, %290 : vector<16x64xf32>
    %293 = arith.mulf %282, %292 : vector<16x64xf32>
    %294 = arith.truncf %293 : vector<16x64xf32> to vector<16x64xbf16>
    %c1_100 = arith.constant 1 : index
    %c0_101 = arith.constant 0 : index
    %c0_102 = arith.constant 0 : index
    %295 = vector.load %arg11[%c1_100, %c0_101, %c0_102] : memref<2x64x32xbf16, #tpu.memory_space<vmem>>, vector<1x64x32xbf16>
    %296 = vector.shape_cast %295 : vector<1x64x32xbf16> to vector<64x32xbf16>
    %cst_103 = arith.constant dense<0.000000e+00> : vector<16x32xf32>
    %297 = tpu.matmul %294, %296, %cst_103 {dimension_numbers = #tpu.dot_dimension_numbers<[1], [0], [0], [1], [0, 0, 1, 1], [], []>} : vector<16x64xbf16>, vector<64x32xbf16>, vector<16x32xf32> -> vector<16x32xf32>
    %298 = arith.addf %273, %297 : vector<16x32xf32>
    %299 = vector.extract_strided_slice %3 {offsets = [1, 0], sizes = [1, 32], strides = [1, 1]} : vector<2x32xf32> to vector<1x32xf32>
    %300 = vector.broadcast %299 : vector<1x32xf32> to vector<16x32xf32>
    %301 = arith.addf %298, %300 : vector<16x32xf32>
    %c1_104 = arith.constant 1 : index
    %c0_105 = arith.constant 0 : index
    %c0_106 = arith.constant 0 : index
    %302 = vector.load %arg13[%c1_104, %c0_105, %c0_106] : memref<2x2x32xf32, #tpu.memory_space<vmem>>, vector<1x2x32xf32>
    %303 = vector.shape_cast %302 : vector<1x2x32xf32> to vector<2x32xf32>
    %cst_107 = arith.constant dense<0.000000e+00> : vector<16xf32>
    %304 = vector.multi_reduction <add>, %301, %cst_107 [1] : vector<16x32xf32> to vector<16xf32>
    %305 = vector.shape_cast %304 : vector<16xf32> to vector<16x1xf32>
    %cst_108 = arith.constant 3.200000e+01 : f32
    %306 = vector.broadcast %cst_108 : f32 to vector<16x1xf32>
    %307 = arith.divf %305, %306 : vector<16x1xf32>
    %308 = vector.broadcast %307 : vector<16x1xf32> to vector<16x32xf32>
    %309 = arith.subf %301, %308 : vector<16x32xf32>
    %310 = arith.mulf %309, %309 : vector<16x32xf32>
    %cst_109 = arith.constant dense<0.000000e+00> : vector<16xf32>
    %311 = vector.multi_reduction <add>, %310, %cst_109 [1] : vector<16x32xf32> to vector<16xf32>
    %312 = vector.shape_cast %311 : vector<16xf32> to vector<16x1xf32>
    %cst_110 = arith.constant 3.200000e+01 : f32
    %313 = vector.broadcast %cst_110 : f32 to vector<16x1xf32>
    %314 = arith.divf %312, %313 : vector<16x1xf32>
    %315 = vector.broadcast %307 : vector<16x1xf32> to vector<16x32xf32>
    %316 = arith.subf %301, %315 : vector<16x32xf32>
    %cst_111 = arith.constant 9.99999996E-13 : f32
    %317 = vector.broadcast %cst_111 : f32 to vector<16x1xf32>
    %318 = arith.addf %314, %317 : vector<16x1xf32>
    %319 = math.rsqrt %318 : vector<16x1xf32>
    %320 = vector.broadcast %319 : vector<16x1xf32> to vector<16x32xf32>
    %321 = arith.mulf %316, %320 : vector<16x32xf32>
    %322 = vector.extract_strided_slice %303 {offsets = [0, 0], sizes = [1, 32], strides = [1, 1]} : vector<2x32xf32> to vector<1x32xf32>
    %323 = vector.broadcast %322 : vector<1x32xf32> to vector<16x32xf32>
    %324 = arith.mulf %321, %323 : vector<16x32xf32>
    %325 = vector.extract_strided_slice %303 {offsets = [1, 0], sizes = [1, 32], strides = [1, 1]} : vector<2x32xf32> to vector<1x32xf32>
    %326 = vector.broadcast %325 : vector<1x32xf32> to vector<16x32xf32>
    %327 = arith.addf %324, %326 : vector<16x32xf32>
    %328 = vector.shape_cast %327 : vector<16x32xf32> to vector<2x8x32xf32>
    %329 = vector.extract_strided_slice %328 {offsets = [0, 0, 0], sizes = [2, 1, 32], strides = [1, 1, 1]} : vector<2x8x32xf32> to vector<2x1x32xf32>
    %330 = vector.shape_cast %329 : vector<2x1x32xf32> to vector<2x32xf32>
    %331 = arith.truncf %330 : vector<2x32xf32> to vector<2x32xbf16>
    %c0_112 = arith.constant 0 : index
    %c0_113 = arith.constant 0 : index
    %332 = vector.load %arg14[%c0_112, %c0_113] : memref<32x32xbf16, #tpu.memory_space<vmem>>, vector<32x32xbf16>
    %cst_114 = arith.constant dense<0.000000e+00> : vector<2x32xf32>
    %333 = tpu.matmul %331, %332, %cst_114 {dimension_numbers = #tpu.dot_dimension_numbers<[1], [0], [0], [1], [0, 0, 1, 1], [], []>} : vector<2x32xbf16>, vector<32x32xbf16>, vector<2x32xf32> -> vector<2x32xf32>
    %c0_115 = arith.constant 0 : index
    %c0_116 = arith.constant 0 : index
    %334 = vector.load %arg15[%c0_115, %c0_116] : memref<1x32xf32, #tpu.memory_space<vmem>>, vector<1x32xf32>
    %335 = vector.broadcast %334 : vector<1x32xf32> to vector<2x32xf32>
    %336 = arith.addf %333, %335 : vector<2x32xf32>
    %337 = math.tanh %336 : vector<2x32xf32>
    %338 = vector.shape_cast %337 : vector<2x32xf32> to vector<2x1x32xf32>
    %c0_117 = arith.constant 0 : index
    %c0_118 = arith.constant 0 : index
    %c0_119 = arith.constant 0 : index
    %339 = vector.load %arg16[%c0_117, %c0_118, %c0_119] : memref<2x1x32xf32, #tpu.memory_space<vmem>>, vector<2x1x32xf32>
    tpu.vector_store %arg16[%c0_117, %c0_118, %c0_119], %338 {strides = array<i32>} : memref<2x1x32xf32, #tpu.memory_space<vmem>>, vector<2x1x32xf32>,
    return
  }
  func.func @transform_0(%arg0: i32) -> (i32, i32, i32) {
    %c0_i32 = arith.constant 0 : i32
    %c0_i32_0 = arith.constant 0 : i32
    %c0_i32_1 = arith.constant 0 : i32
    return %arg0, %c0_i32, %c0_i32_0 : i32, i32, i32
  }
  func.func @transform_1(%arg0: i32) -> (i32, i32, i32) {
    %c0_i32 = arith.constant 0 : i32
    %c0_i32_0 = arith.constant 0 : i32
    %c0_i32_1 = arith.constant 0 : i32
    return %arg0, %c0_i32, %c0_i32_0 : i32, i32, i32
  }
  func.func @transform_2(%arg0: i32) -> (i32, i32) {
    %c0_i32 = arith.constant 0 : i32
    %c0_i32_0 = arith.constant 0 : i32
    %c0_i32_1 = arith.constant 0 : i32
    return %c0_i32, %c0_i32_0 : i32, i32
  }
  func.func @transform_3(%arg0: i32) -> (i32, i32, i32) {
    %c0_i32 = arith.constant 0 : i32
    %c0_i32_0 = arith.constant 0 : i32
    %c0_i32_1 = arith.constant 0 : i32
    %c0_i32_2 = arith.constant 0 : i32
    return %c0_i32, %c0_i32_0, %c0_i32_1 : i32, i32, i32
  }
  func.func @transform_4(%arg0: i32) -> (i32, i32) {
    %c0_i32 = arith.constant 0 : i32
    %c0_i32_0 = arith.constant 0 : i32
    %c0_i32_1 = arith.constant 0 : i32
    return %c0_i32, %c0_i32_0 : i32, i32
  }
  func.func @transform_5(%arg0: i32) -> (i32, i32, i32, i32) {
    %c0_i32 = arith.constant 0 : i32
    %c0_i32_0 = arith.constant 0 : i32
    %c0_i32_1 = arith.constant 0 : i32
    %c0_i32_2 = arith.constant 0 : i32
    %c0_i32_3 = arith.constant 0 : i32
    return %c0_i32, %c0_i32_0, %c0_i32_1, %c0_i32_2 : i32, i32, i32, i32
  }
  func.func @transform_6(%arg0: i32) -> (i32, i32) {
    %c0_i32 = arith.constant 0 : i32
    %c0_i32_0 = arith.constant 0 : i32
    %c0_i32_1 = arith.constant 0 : i32
    return %c0_i32, %c0_i32_0 : i32, i32
  }
  func.func @transform_7(%arg0: i32) -> (i32, i32, i32) {
    %c0_i32 = arith.constant 0 : i32
    %c0_i32_0 = arith.constant 0 : i32
    %c0_i32_1 = arith.constant 0 : i32
    %c0_i32_2 = arith.constant 0 : i32
    return %c0_i32, %c0_i32_0, %c0_i32_1 : i32, i32, i32
  }
  func.func @transform_8(%arg0: i32) -> (i32, i32, i32) {
    %c0_i32 = arith.constant 0 : i32
    %c0_i32_0 = arith.constant 0 : i32
    %c0_i32_1 = arith.constant 0 : i32
    %c0_i32_2 = arith.constant 0 : i32
    return %c0_i32, %c0_i32_0, %c0_i32_1 : i32, i32, i32
  }
  func.func @transform_9(%arg0: i32) -> (i32, i32) {
    %c0_i32 = arith.constant 0 : i32
    %c0_i32_0 = arith.constant 0 : i32
    %c0_i32_1 = arith.constant 0 : i32
    return %c0_i32, %c0_i32_0 : i32, i32
  }
  func.func @transform_10(%arg0: i32) -> (i32, i32, i32) {
    %c0_i32 = arith.constant 0 : i32
    %c0_i32_0 = arith.constant 0 : i32
    %c0_i32_1 = arith.constant 0 : i32
    %c0_i32_2 = arith.constant 0 : i32
    return %c0_i32, %c0_i32_0, %c0_i32_1 : i32, i32, i32
  }
  func.func @transform_11(%arg0: i32) -> (i32, i32) {
    %c0_i32 = arith.constant 0 : i32
    %c0_i32_0 = arith.constant 0 : i32
    %c0_i32_1 = arith.constant 0 : i32
    return %c0_i32, %c0_i32_0 : i32, i32
  }
  func.func @transform_12(%arg0: i32) -> (i32, i32, i32) {
    %c0_i32 = arith.constant 0 : i32
    %c0_i32_0 = arith.constant 0 : i32
    %c0_i32_1 = arith.constant 0 : i32
    %c0_i32_2 = arith.constant 0 : i32
    return %c0_i32, %c0_i32_0, %c0_i32_1 : i32, i32, i32
  }
  func.func @transform_13(%arg0: i32) -> (i32, i32) {
    %c0_i32 = arith.constant 0 : i32
    %c0_i32_0 = arith.constant 0 : i32
    %c0_i32_1 = arith.constant 0 : i32
    return %c0_i32, %c0_i32_0 : i32, i32
  }
  func.func @transform_14(%arg0: i32) -> (i32, i32) {
    %c0_i32 = arith.constant 0 : i32
    %c0_i32_0 = arith.constant 0 : i32
    %c0_i32_1 = arith.constant 0 : i32
    return %c0_i32, %c0_i32_0 : i32, i32
  }
  func.func @transform_15(%arg0: i32) -> (i32, i32, i32) {
    %c0_i32 = arith.constant 0 : i32
    %c0_i32_0 = arith.constant 0 : i32
    %c0_i32_1 = arith.constant 0 : i32
    return %arg0, %c0_i32, %c0_i32_0 : i32, i32, i32
  }
}

</mosaic_0001>

<llo_original>
// kernel: _lambda_.1
$region0: #{_lambda_.1}
  #allocation0 [shape = 'u32[]', space=smem, size = 0x4, offset = 0x4, fixed_abs, tag = 'smem constant byte address 0x4 - core index']
  #allocation1 [shape = 'u32[144,128]{1,0:T(1,128)}', space=vmem, size = 0x12000, scoped, tag = 'internal scratch']
  %s0 = inlined_call_operand.vmem [shape: f32[2,8,32], index: 0, kind: input, shape index: {}]
  %s1 = inlined_call_operand.vmem [shape: f32[2,1,8], index: 1, kind: input, shape index: {}]
  %s2 = inlined_call_operand.vmem [shape: f32[2,32], index: 2, kind: input, shape index: {}]
  %s3 = inlined_call_operand.vmem [shape: bf16[2,32,96], index: 3, kind: input, shape index: {}]
  %s4 = inlined_call_operand.vmem [shape: f32[2,96], index: 4, kind: input, shape index: {}]
  %s5 = inlined_call_operand.vmem [shape: bf16[2,2,16,32], index: 5, kind: input, shape index: {}]
  %s6 = inlined_call_operand.vmem [shape: f32[2,32], index: 6, kind: input, shape index: {}]
  %s7 = inlined_call_operand.vmem [shape: f32[2,2,32], index: 7, kind: input, shape index: {}]
  %s8 = inlined_call_operand.vmem [shape: bf16[2,32,64], index: 8, kind: input, shape index: {}]
  %s9 = inlined_call_operand.vmem [shape: f32[2,64], index: 9, kind: input, shape index: {}]
  %s10 = inlined_call_operand.vmem [shape: bf16[2,64,32], index: 10, kind: input, shape index: {}]
  %s11 = inlined_call_operand.vmem [shape: f32[2,32], index: 11, kind: input, shape index: {}]
  %s12 = inlined_call_operand.vmem [shape: f32[2,2,32], index: 12, kind: input, shape index: {}]
  %s13 = inlined_call_operand.vmem [shape: bf16[32,32], index: 13, kind: input, shape index: {}]
  %s14 = inlined_call_operand.vmem [shape: f32[1,32], index: 14, kind: input, shape index: {}]
  %s15 = inlined_call_operand.hbm [shape: f32[2,1,32], index: 15, kind: output, shape index: {}]
  %s16 = sld [smem:[#allocation0]]
  $region70: #{_lambda_.1} parent=0
    _
  %s18 = ssub.s32 1, %s16
  %s19 = scalar_select 0, %s18, %s16
  $region1: #{_lambda_.1} parent=0
    #allocation2 [shape = 'u8[1024]{0}', space=vmem, size = 0x400, scoped, tag = 'output window, operand 0, single buffered']
    #allocation3 [shape = 's32[1]{0}', space=sflag, size = 0x4, scoped, tag = 'scoped memory for _lambda_.1']
    %20 = vsyncpa [#allocation3], 0
    // Predicated region
    $region2: #{_lambda_.1} parent=1 // pred_check
      _
    $region3: #{_lambda_.1} parent=1 // pred_check_branch
      %22 = sbr.rel (0) target = $region5
    $region4: #{_lambda_.1} parent=1 // pred_region
      _
    $region5: #{_lambda_.1} parent=1 // pred_fallthru
      _
    // Predicated region
    $region6: #{_lambda_.1} parent=1 // pred_check
      _
    $region7: #{_lambda_.1} parent=1 // pred_check_branch
      %24 = sbr.rel (0) target = $region9
    $region8: #{_lambda_.1} parent=1 // pred_region
      _
    $region9: #{_lambda_.1} parent=1 // pred_fallthru
      _
    // Predicated region
    $region10: #{_lambda_.1} parent=1 // pred_check
      _
    $region11: #{_lambda_.1} parent=1 // pred_check_branch
      %26 = sbr.rel (0) target = $region13
    $region12: #{_lambda_.1} parent=1 // pred_region
      _
    $region13: #{_lambda_.1} parent=1 // pred_fallthru
      _
    // Predicated region
    $region14: #{_lambda_.1} parent=1 // pred_check
      _
    $region15: #{_lambda_.1} parent=1 // pred_check_branch
      %28 = sbr.rel (0) target = $region17
    $region16: #{_lambda_.1} parent=1 // pred_region
      _
    $region17: #{_lambda_.1} parent=1 // pred_fallthru
      _
    // Predicated region
    $region18: #{_lambda_.1} parent=1 // pred_check
      _
    $region19: #{_lambda_.1} parent=1 // pred_check_branch
      %30 = sbr.rel (0) target = $region21
    $region20: #{_lambda_.1} parent=1 // pred_region
      _
    $region21: #{_lambda_.1} parent=1 // pred_fallthru
      _
    // Predicated region
    $region22: #{_lambda_.1} parent=1 // pred_check
      _
    $region23: #{_lambda_.1} parent=1 // pred_check_branch
      %32 = sbr.rel (0) target = $region25
    $region24: #{_lambda_.1} parent=1 // pred_region
      _
    $region25: #{_lambda_.1} parent=1 // pred_fallthru
      _
    // Predicated region
    $region26: #{_lambda_.1} parent=1 // pred_check
      _
    $region27: #{_lambda_.1} parent=1 // pred_check_branch
      %34 = sbr.rel (0) target = $region29
    $region28: #{_lambda_.1} parent=1 // pred_region
      _
    $region29: #{_lambda_.1} parent=1 // pred_fallthru
      _
    // Predicated region
    $region30: #{_lambda_.1} parent=1 // pred_check
      _
    $region31: #{_lambda_.1} parent=1 // pred_check_branch
      %36 = sbr.rel (0) target = $region33
    $region32: #{_lambda_.1} parent=1 // pred_region
      _
    $region33: #{_lambda_.1} parent=1 // pred_fallthru
      _
    // Predicated region
    $region34: #{_lambda_.1} parent=1 // pred_check
      _
    $region35: #{_lambda_.1} parent=1 // pred_check_branch
      %38 = sbr.rel (0) target = $region37
    $region36: #{_lambda_.1} parent=1 // pred_region
      _
    $region37: #{_lambda_.1} parent=1 // pred_fallthru
      _
    // Predicated region
    $region38: #{_lambda_.1} parent=1 // pred_check
      _
    $region39: #{_lambda_.1} parent=1 // pred_check_branch
      %40 = sbr.rel (0) target = $region41
    $region40: #{_lambda_.1} parent=1 // pred_region
      _
    $region41: #{_lambda_.1} parent=1 // pred_fallthru
      _
    // Predicated region
    $region42: #{_lambda_.1} parent=1 // pred_check
      _
    $region43: #{_lambda_.1} parent=1 // pred_check_branch
      %42 = sbr.rel (0) target = $region45
    $region44: #{_lambda_.1} parent=1 // pred_region
      _
    $region45: #{_lambda_.1} parent=1 // pred_fallthru
      _
    // Predicated region
    $region46: #{_lambda_.1} parent=1 // pred_check
      _
    $region47: #{_lambda_.1} parent=1 // pred_check_branch
      %44 = sbr.rel (0) target = $region49
    $region48: #{_lambda_.1} parent=1 // pred_region
      _
    $region49: #{_lambda_.1} parent=1 // pred_fallthru
      _
    // Predicated region
    $region50: #{_lambda_.1} parent=1 // pred_check
      _
    $region51: #{_lambda_.1} parent=1 // pred_check_branch
      %46 = sbr.rel (0) target = $region53
    $region52: #{_lambda_.1} parent=1 // pred_region
      _
    $region53: #{_lambda_.1} parent=1 // pred_fallthru
      _
    // Predicated region
    $region54: #{_lambda_.1} parent=1 // pred_check
      _
    $region55: #{_lambda_.1} parent=1 // pred_check_branch
      %48 = sbr.rel (0) target = $region57
    $region56: #{_lambda_.1} parent=1 // pred_region
      _
    $region57: #{_lambda_.1} parent=1 // pred_fallthru
      _
    // Predicated region
    $region58: #{_lambda_.1} parent=1 // pred_check
      _
    $region59: #{_lambda_.1} parent=1 // pred_check_branch
      %50 = sbr.rel (0) target = $region61
    $region60: #{_lambda_.1} parent=1 // pred_region
      _
    $region61: #{_lambda_.1} parent=1 // pred_fallthru
      _
    %v52 = vld [vmem:[%s4] sm:$0x3]
    %v53 = vld [vmem:[%s6] sm:$0x3]
    %v54 = vld [vmem:[%s9] sm:$0x3]
    %v55 = vld [vmem:[%s11] sm:$0x3]
    %v56 = vld [vmem:[%s1] sm:$0x1]
    %v57 = vld [vmem:[%s1 + $0x1] sm:$0x1]
    %v60 = vlaneseq
    %v61 = vshrl.u32 %v60, 7
    %v62 = vsub.s32 0, %v61
    %v63 = vrot.slane %v56, %v62
    %v64 = vlaneseq
    %v65 = vshrl.u32 %v64, 7
    %v66 = vsub.s32 0, %v65
    %v67 = vrot.slane %v57, %v66
    %v70 = vld [vmem:[%s0] sm:$0xff]
    %v71 = vld [vmem:[%s0 + $0x8] sm:$0xff]
    %v72 = vld [vmem:[%s2] sm:$0x3]
    %vm73 = vcmask 261120
    %v74 = vsel %vm73, %v70, 0.0
    %75 = vadd.xlane.f32.xlu0 %v74
    %v76 = vpop.xlane.xlu0 %75
    %v77 = vsel %vm73, %v71, 0.0
    %78 = vadd.xlane.f32.xlu0 %v77
    %v79 = vpop.xlane.xlu0 %78
    %v80 = vrcp.pop 32.0
    %v81 = vmul.f32 %v76, %v80
    %v82 = vmul.f32 %v79, %v80
    %v83 = vsub.f32 %v70, %v81
    %v84 = vsub.f32 %v71, %v82
    %v85 = vmul.f32 %v83, %v83
    %v86 = vmul.f32 %v84, %v84
    %v87 = vsel %vm73, %v85, 0.0
    %88 = vadd.xlane.f32.xlu0 %v87
    %v89 = vpop.xlane.xlu0 %88
    %v90 = vsel %vm73, %v86, 0.0
    %91 = vadd.xlane.f32.xlu0 %v90
    %v92 = vpop.xlane.xlu0 %91
    %v93 = vmul.f32 %v89, %v80
    %v94 = vmul.f32 %v92, %v80
    %v95 = vadd.f32 %v93, 1e-12
    %v96 = vadd.f32 %v94, 1e-12
    %v97 = vrsqrt.pop %v95
    %v98 = vrsqrt.pop %v96
    %v99 = vmul.f32 %v83, %v97
    %v100 = vmul.f32 %v84, %v98
    %v101 = vlaneseq
    %v102 = vshrl.u32 %v101, 7
    %v103 = vsub.s32 0, %v102
    %v104 = vrot.slane %v72, %v103
    %v105 = vmul.f32 %v99, %v104
    %v106 = vmul.f32 %v100, %v104
    %v107 = vlaneseq
    %v108 = vshrl.u32 %v107, 7
    %v109 = vsub.s32 1, %v108
    %v110 = vrot.slane %v72, %v109
    %v111 = vadd.f32 %v105, %v110
    %v112 = vadd.f32 %v106, %v110
    %v113 = vpack.c.bf16 %v112, %v111
    %v114 = vld [vmem:[%s3] sm:$0xf]
    %v115 = vld [vmem:[%s3 + $0x4] sm:$0xf]
    %v116 = vld [vmem:[%s3 + $0x8] sm:$0xf]
    %v117 = vld [vmem:[%s3 + $0xc] sm:$0xf]
    %v118 = vlaneseq
    %v119 = vshrl.u32 %v118, 7
    %v120 = vsub.s32 0, %v119
    %v121 = vrot.slane %v52, %v120
    %v126 = vunpack.c.l.b16 %v114
    %v127 = vunpack.c.l.b16 %v115
    %v128 = vunpack.c.l.b16 %v116
    %v129 = vunpack.c.l.b16 %v117
    %v130 = vpack.c.b16 %v127, %v126
    %v131 = vpack.c.b16 %v129, %v128
    %v135 = vsel %vm73, %v113, 0
    %137 = vmatprep.subr.bf16.mxu0 0
    %138 = vmatpush1.bf16.msra.mxu0 %v130
    %139 = vmatprep.subr.bf16.mxu0 0
    %140 = vmatpush1.bf16.msra.mxu0 %v131
    %141 = vmatprep.subr.bf16.mxu0 0
    %142 = vmatpush1.bf16.msra.mxu0 0
    %143 = vmatprep.subr.bf16.mxu0 0
    %144 = vmatpush1.bf16.msra.mxu0 0
    %145 = vmatprep.subr.bf16.mxu0 0
    %146 = vmatpush1.bf16.msra.mxu0 0
    %147 = vmatprep.subr.bf16.mxu0 0
    %148 = vmatpush1.bf16.msra.mxu0 0
    %149 = vmatprep.subr.bf16.mxu0 0
    %150 = vmatpush1.bf16.msra.mxu0 0
    %151 = vmatprep.subr.bf16.mxu0 0
    %152 = vmatpush1.bf16.msra.mxu0 0
    %153 = vmatprep.subr.bf16.mxu0 0
    %154 = vmatpush1.bf16.msra.mxu0 0
    %155 = vmatprep.subr.bf16.mxu0 0
    %156 = vmatpush1.bf16.msra.mxu0 0
    %157 = vmatprep.subr.bf16.mxu0 0
    %158 = vmatpush1.bf16.msra.mxu0 0
    %159 = vmatprep.subr.bf16.mxu0 0
    %160 = vmatpush1.bf16.msra.mxu0 0
    %161 = vmatprep.subr.bf16.mxu0 0
    %162 = vmatpush1.bf16.msra.mxu0 0
    %163 = vmatprep.subr.bf16.mxu0 0
    %164 = vmatpush1.bf16.msra.mxu0 0
    %165 = vmatprep.subr.bf16.mxu0 0
    %166 = vmatpush1.bf16.msra.mxu0 0
    %167 = vmatprep.subr.bf16.mxu0 0
    %168 = vmatpush1.bf16.msra.mxu0 0
    %169 = vmatprep.mubr.bf16.mxu0 0
    %170 = vmatmul.mubr.bf16.gmra.mrb[0].mxu0 %v135
    %v171 = vpop.f32.mrb[0].mxu0
    %v172 = vadd.f32 %v121, %v171
    %v173 = vpop.f32.mrb[0].mxu0
    %v174 = vpop.f32.mrb[0].mxu0
    %v175 = vadd.f32 %v121, %v174
    %v176 = vpop.f32.mrb[0].mxu0
    %177 = vdwg.mxu0
    %v178 = vpack.c.bf16 %v175, %v172
    %v179 = vld [vmem:[%s5] sm:$0xf]
    %v180 = vld [vmem:[%s5 + $0x4] sm:$0xf]
    %v181 = vld [vmem:[%s5 + $0x8] sm:$0xf]
    %v182 = vld [vmem:[%s5 + $0xc] sm:$0xf]
    %v184 = vunpack.c.l.b16 %v178
    %v185 = vunpack.c.h.b16 %v178
    %v186 = vpack.c.b16 %v184, %v184
    %v187 = vpack.c.b16 %v185, %v185
    %188 = vrot.lane.b32.xlu0 %v186, 96
    %v189 = vpop.permute.xlu0 %188
    %vm190 = vcmask 130048
    %v192 = vsel %vm190, %v186, 0
    %v195 = vsel %vm190, %v189, 0
    %197 = vmatprep.subr.bf16.mxu0 0
    %198 = vmatpush1.bf16.xpose.msra.mxu0 %v195
    %199 = vmatprep.subr.bf16.mxu0 0
    %200 = vmatpush1.bf16.xpose.msra.mxu0 0
    %201 = vmatprep.subr.bf16.mxu0 0
    %202 = vmatpush1.bf16.xpose.msra.mxu0 0
    %203 = vmatprep.subr.bf16.mxu0 0
    %204 = vmatpush1.bf16.xpose.msra.mxu0 0
    %205 = vmatprep.subr.bf16.mxu0 0
    %206 = vmatpush1.bf16.xpose.msra.mxu0 0
    %207 = vmatprep.subr.bf16.mxu0 0
    %208 = vmatpush1.bf16.xpose.msra.mxu0 0
    %209 = vmatprep.subr.bf16.mxu0 0
    %210 = vmatpush1.bf16.xpose.msra.mxu0 0
    %211 = vmatprep.subr.bf16.mxu0 0
    %212 = vmatpush1.bf16.xpose.msra.mxu0 0
    %213 = vmatprep.subr.bf16.mxu0 0
    %214 = vmatpush1.bf16.xpose.msra.mxu0 0
    %215 = vmatprep.subr.bf16.mxu0 0
    %216 = vmatpush1.bf16.xpose.msra.mxu0 0
    %217 = vmatprep.subr.bf16.mxu0 0
    %218 = vmatpush1.bf16.xpose.msra.mxu0 0
    %219 = vmatprep.subr.bf16.mxu0 0
    %220 = vmatpush1.bf16.xpose.msra.mxu0 0
    %221 = vmatprep.subr.bf16.mxu0 0
    %222 = vmatpush1.bf16.xpose.msra.mxu0 0
    %223 = vmatprep.subr.bf16.mxu0 0
    %224 = vmatpush1.bf16.xpose.msra.mxu0 0
    %225 = vmatprep.subr.bf16.mxu0 0
    %226 = vmatpush1.bf16.xpose.msra.mxu0 0
    %227 = vmatprep.subr.bf16.mxu0 0
    %228 = vmatpush1.bf16.xpose.msra.mxu0 0
    %229 = vmatprep.mubr.bf16.mxu0 0
    %230 = vmatmul.mubr.bf16.gmra.mrb[0].mxu0 %v192
    %v231 = vpop.f32.mrb[0].mxu0
    %v232 = vadd.f32 %v63, %v231
    %v233 = vpop.f32.mrb[0].mxu0
    %v234 = vpop.f32.mrb[0].mxu0
    %v235 = vpop.f32.mrb[0].mxu0
    %236 = vdwg.mxu0
    %237 = vrot.lane.b32.xlu0 %v187, 96
    %v238 = vpop.permute.xlu0 %237
    %v240 = vsel %vm190, %v187, 0
    %v243 = vsel %vm190, %v238, 0
    %245 = vmatprep.subr.bf16.mxu0 0
    %246 = vmatpush1.bf16.xpose.msra.mxu0 %v243
    %247 = vmatprep.subr.bf16.mxu0 0
    %248 = vmatpush1.bf16.xpose.msra.mxu0 0
    %249 = vmatprep.subr.bf16.mxu0 0
    %250 = vmatpush1.bf16.xpose.msra.mxu0 0
    %251 = vmatprep.subr.bf16.mxu0 0
    %252 = vmatpush1.bf16.xpose.msra.mxu0 0
    %253 = vmatprep.subr.bf16.mxu0 0
    %254 = vmatpush1.bf16.xpose.msra.mxu0 0
    %255 = vmatprep.subr.bf16.mxu0 0
    %256 = vmatpush1.bf16.xpose.msra.mxu0 0
    %257 = vmatprep.subr.bf16.mxu0 0
    %258 = vmatpush1.bf16.xpose.msra.mxu0 0
    %259 = vmatprep.subr.bf16.mxu0 0
    %260 = vmatpush1.bf16.xpose.msra.mxu0 0
    %261 = vmatprep.subr.bf16.mxu0 0
    %262 = vmatpush1.bf16.xpose.msra.mxu0 0
    %263 = vmatprep.subr.bf16.mxu0 0
    %264 = vmatpush1.bf16.xpose.msra.mxu0 0
    %265 = vmatprep.subr.bf16.mxu0 0
    %266 = vmatpush1.bf16.xpose.msra.mxu0 0
    %267 = vmatprep.subr.bf16.mxu0 0
    %268 = vmatpush1.bf16.xpose.msra.mxu0 0
    %269 = vmatprep.subr.bf16.mxu0 0
    %270 = vmatpush1.bf16.xpose.msra.mxu0 0
    %271 = vmatprep.subr.bf16.mxu0 0
    %272 = vmatpush1.bf16.xpose.msra.mxu0 0
    %273 = vmatprep.subr.bf16.mxu0 0
    %274 = vmatpush1.bf16.xpose.msra.mxu0 0
    %275 = vmatprep.subr.bf16.mxu0 0
    %276 = vmatpush1.bf16.xpose.msra.mxu0 0
    %277 = vmatprep.mubr.bf16.mxu0 0
    %278 = vmatmul.mubr.bf16.gmra.mrb[0].mxu0 %v240
    %v279 = vpop.f32.mrb[0].mxu0
    %v280 = vadd.f32 %v67, %v279
    %v281 = vpop.f32.mrb[0].mxu0
    %v282 = vpop.f32.mrb[0].mxu0
    %v283 = vpop.f32.mrb[0].mxu0
    %284 = vdwg.mxu0
    %vm285 = vcmask 64512
    %v286 = vsel %vm285, %v232, -inf
    %287 = vmax.xlane.f32.xlu0 %v286
    %v288 = vpop.xlane.xlu0 %287
    %v289 = vsel %vm285, %v280, -inf
    %290 = vmax.xlane.f32.xlu0 %v289
    %v291 = vpop.xlane.xlu0 %290
    %v292 = vsub.f32 %v232, %v288
    %v293 = vsub.f32 %v280, %v291
    %v294 = vmul.f32 %v292, 1.442695
    %v295 = vpow.pop %v294
    %v296 = vmul.f32 %v293, 1.442695
    %v297 = vpow.pop %v296
    %v298 = vsel %vm285, %v295, 0.0
    %299 = vadd.xlane.f32.xlu0 %v298
    %v300 = vpop.xlane.xlu0 %299
    %v301 = vsel %vm285, %v297, 0.0
    %302 = vadd.xlane.f32.xlu0 %v301
    %v303 = vpop.xlane.xlu0 %302
    %v304 = vrcp.pop %v300
    %v305 = vrcp.pop %v303
    %v306 = vmul.f32 %v295, %v304
    %v307 = vmul.f32 %v297, %v305
    %v308 = vpack.c.bf16 %v306, %v306
    %v309 = vpack.c.bf16 %v307, %v307
    %310 = vrot.lane.b32.xlu0 %v186, 64
    %v311 = vpop.permute.xlu0 %310
    %v313 = vsel %vm285, %v308, 0
    %vm315 = vcmask 1043456
    %v317 = vsel %vm315, %v311, 0
    %319 = vmatprep.subr.bf16.mxu0 0
    %320 = vmatpush1.bf16.msra.mxu0 %v317
    %321 = vmatprep.subr.bf16.mxu0 0
    %322 = vmatpush1.bf16.msra.mxu0 0
    %323 = vmatprep.subr.bf16.mxu0 0
    %324 = vmatpush1.bf16.msra.mxu0 0
    %325 = vmatprep.subr.bf16.mxu0 0
    %326 = vmatpush1.bf16.msra.mxu0 0
    %327 = vmatprep.subr.bf16.mxu0 0
    %328 = vmatpush1.bf16.msra.mxu0 0
    %329 = vmatprep.subr.bf16.mxu0 0
    %330 = vmatpush1.bf16.msra.mxu0 0
    %331 = vmatprep.subr.bf16.mxu0 0
    %332 = vmatpush1.bf16.msra.mxu0 0
    %333 = vmatprep.subr.bf16.mxu0 0
    %334 = vmatpush1.bf16.msra.mxu0 0
    %335 = vmatprep.subr.bf16.mxu0 0
    %336 = vmatpush1.bf16.msra.mxu0 0
    %337 = vmatprep.subr.bf16.mxu0 0
    %338 = vmatpush1.bf16.msra.mxu0 0
    %339 = vmatprep.subr.bf16.mxu0 0
    %340 = vmatpush1.bf16.msra.mxu0 0
    %341 = vmatprep.subr.bf16.mxu0 0
    %342 = vmatpush1.bf16.msra.mxu0 0
    %343 = vmatprep.subr.bf16.mxu0 0
    %344 = vmatpush1.bf16.msra.mxu0 0
    %345 = vmatprep.subr.bf16.mxu0 0
    %346 = vmatpush1.bf16.msra.mxu0 0
    %347 = vmatprep.subr.bf16.mxu0 0
    %348 = vmatpush1.bf16.msra.mxu0 0
    %349 = vmatprep.subr.bf16.mxu0 0
    %350 = vmatpush1.bf16.msra.mxu0 0
    %351 = vmatprep.mubr.bf16.mxu0 0
    %352 = vmatmul.mubr.bf16.gmra.mrb[0].mxu0 %v313
    %v353 = vpop.f32.mrb[0].mxu0
    %v354 = vadd.f32 0.0, %v353
    %v355 = vpop.f32.mrb[0].mxu0
    %v356 = vpop.f32.mrb[0].mxu0
    %v357 = vpop.f32.mrb[0].mxu0
    %358 = vdwg.mxu0
    %359 = vrot.lane.b32.xlu0 %v187, 64
    %v360 = vpop.permute.xlu0 %359
    %v362 = vsel %vm285, %v309, 0
    %v365 = vsel %vm315, %v360, 0
    %367 = vmatprep.subr.bf16.mxu0 0
    %368 = vmatpush1.bf16.msra.mxu0 %v365
    %369 = vmatprep.subr.bf16.mxu0 0
    %370 = vmatpush1.bf16.msra.mxu0 0
    %371 = vmatprep.subr.bf16.mxu0 0
    %372 = vmatpush1.bf16.msra.mxu0 0
    %373 = vmatprep.subr.bf16.mxu0 0
    %374 = vmatpush1.bf16.msra.mxu0 0
    %375 = vmatprep.subr.bf16.mxu0 0
    %376 = vmatpush1.bf16.msra.mxu0 0
    %377 = vmatprep.subr.bf16.mxu0 0
    %378 = vmatpush1.bf16.msra.mxu0 0
    %379 = vmatprep.subr.bf16.mxu0 0
    %380 = vmatpush1.bf16.msra.mxu0 0
    %381 = vmatprep.subr.bf16.mxu0 0
    %382 = vmatpush1.bf16.msra.mxu0 0
    %383 = vmatprep.subr.bf16.mxu0 0
    %384 = vmatpush1.bf16.msra.mxu0 0
    %385 = vmatprep.subr.bf16.mxu0 0
    %386 = vmatpush1.bf16.msra.mxu0 0
    %387 = vmatprep.subr.bf16.mxu0 0
    %388 = vmatpush1.bf16.msra.mxu0 0
    %389 = vmatprep.subr.bf16.mxu0 0
    %390 = vmatpush1.bf16.msra.mxu0 0
    %391 = vmatprep.subr.bf16.mxu0 0
    %392 = vmatpush1.bf16.msra.mxu0 0
    %393 = vmatprep.subr.bf16.mxu0 0
    %394 = vmatpush1.bf16.msra.mxu0 0
    %395 = vmatprep.subr.bf16.mxu0 0
    %396 = vmatpush1.bf16.msra.mxu0 0
    %397 = vmatprep.subr.bf16.mxu0 0
    %398 = vmatpush1.bf16.msra.mxu0 0
    %399 = vmatprep.mubr.bf16.mxu0 0
    %400 = vmatmul.mubr.bf16.gmra.mrb[0].mxu0 %v362
    %v401 = vpop.f32.mrb[0].mxu0
    %v402 = vadd.f32 0.0, %v401
    %v403 = vpop.f32.mrb[0].mxu0
    %v404 = vpop.f32.mrb[0].mxu0
    %v405 = vpop.f32.mrb[0].mxu0
    %406 = vdwg.mxu0
    %v407 = vpack.c.bf16 %v402, %v354
    %408 = vrot.lane.b32.xlu0 %v186, 112
    %v409 = vpop.permute.xlu0 %408
    %410 = vrot.lane.b32.xlu0 %v186, 80
    %v411 = vpop.permute.xlu0 %410
    %v413 = vsel %vm190, %v409, 0
    %v416 = vsel %vm190, %v411, 0
    %418 = vmatprep.subr.bf16.mxu0 0
    %419 = vmatpush1.bf16.xpose.msra.mxu0 %v416
    %420 = vmatprep.subr.bf16.mxu0 0
    %421 = vmatpush1.bf16.xpose.msra.mxu0 0
    %422 = vmatprep.subr.bf16.mxu0 0
    %423 = vmatpush1.bf16.xpose.msra.mxu0 0
    %424 = vmatprep.subr.bf16.mxu0 0
    %425 = vmatpush1.bf16.xpose.msra.mxu0 0
    %426 = vmatprep.subr.bf16.mxu0 0
    %427 = vmatpush1.bf16.xpose.msra.mxu0 0
    %428 = vmatprep.subr.bf16.mxu0 0
    %429 = vmatpush1.bf16.xpose.msra.mxu0 0
    %430 = vmatprep.subr.bf16.mxu0 0
    %431 = vmatpush1.bf16.xpose.msra.mxu0 0
    %432 = vmatprep.subr.bf16.mxu0 0
    %433 = vmatpush1.bf16.xpose.msra.mxu0 0
    %434 = vmatprep.subr.bf16.mxu0 0
    %435 = vmatpush1.bf16.xpose.msra.mxu0 0
    %436 = vmatprep.subr.bf16.mxu0 0
    %437 = vmatpush1.bf16.xpose.msra.mxu0 0
    %438 = vmatprep.subr.bf16.mxu0 0
    %439 = vmatpush1.bf16.xpose.msra.mxu0 0
    %440 = vmatprep.subr.bf16.mxu0 0
    %441 = vmatpush1.bf16.xpose.msra.mxu0 0
    %442 = vmatprep.subr.bf16.mxu0 0
    %443 = vmatpush1.bf16.xpose.msra.mxu0 0
    %444 = vmatprep.subr.bf16.mxu0 0
    %445 = vmatpush1.bf16.xpose.msra.mxu0 0
    %446 = vmatprep.subr.bf16.mxu0 0
    %447 = vmatpush1.bf16.xpose.msra.mxu0 0
    %448 = vmatprep.subr.bf16.mxu0 0
    %449 = vmatpush1.bf16.xpose.msra.mxu0 0
    %450 = vmatprep.mubr.bf16.mxu0 0
    %451 = vmatmul.mubr.bf16.gmra.mrb[0].mxu0 %v413
    %v452 = vpop.f32.mrb[0].mxu0
    %v453 = vadd.f32 %v63, %v452
    %v454 = vpop.f32.mrb[0].mxu0
    %v455 = vpop.f32.mrb[0].mxu0
    %v456 = vpop.f32.mrb[0].mxu0
    %457 = vdwg.mxu0
    %458 = vrot.lane.b32.xlu0 %v187, 112
    %v459 = vpop.permute.xlu0 %458
    %460 = vrot.lane.b32.xlu0 %v187, 80
    %v461 = vpop.permute.xlu0 %460
    %v463 = vsel %vm190, %v459, 0
    %v466 = vsel %vm190, %v461, 0
    %468 = vmatprep.subr.bf16.mxu0 0
    %469 = vmatpush1.bf16.xpose.msra.mxu0 %v466
    %470 = vmatprep.subr.bf16.mxu0 0
    %471 = vmatpush1.bf16.xpose.msra.mxu0 0
    %472 = vmatprep.subr.bf16.mxu0 0
    %473 = vmatpush1.bf16.xpose.msra.mxu0 0
    %474 = vmatprep.subr.bf16.mxu0 0
    %475 = vmatpush1.bf16.xpose.msra.mxu0 0
    %476 = vmatprep.subr.bf16.mxu0 0
    %477 = vmatpush1.bf16.xpose.msra.mxu0 0
    %478 = vmatprep.subr.bf16.mxu0 0
    %479 = vmatpush1.bf16.xpose.msra.mxu0 0
    %480 = vmatprep.subr.bf16.mxu0 0
    %481 = vmatpush1.bf16.xpose.msra.mxu0 0
    %482 = vmatprep.subr.bf16.mxu0 0
    %483 = vmatpush1.bf16.xpose.msra.mxu0 0
    %484 = vmatprep.subr.bf16.mxu0 0
    %485 = vmatpush1.bf16.xpose.msra.mxu0 0
    %486 = vmatprep.subr.bf16.mxu0 0
    %487 = vmatpush1.bf16.xpose.msra.mxu0 0
    %488 = vmatprep.subr.bf16.mxu0 0
    %489 = vmatpush1.bf16.xpose.msra.mxu0 0
    %490 = vmatprep.subr.bf16.mxu0 0
    %491 = vmatpush1.bf16.xpose.msra.mxu0 0
    %492 = vmatprep.subr.bf16.mxu0 0
    %493 = vmatpush1.bf16.xpose.msra.mxu0 0
    %494 = vmatprep.subr.bf16.mxu0 0
    %495 = vmatpush1.bf16.xpose.msra.mxu0 0
    %496 = vmatprep.subr.bf16.mxu0 0
    %497 = vmatpush1.bf16.xpose.msra.mxu0 0
    %498 = vmatprep.subr.bf16.mxu0 0
    %499 = vmatpush1.bf16.xpose.msra.mxu0 0
    %500 = vmatprep.mubr.bf16.mxu0 0
    %501 = vmatmul.mubr.bf16.gmra.mrb[0].mxu0 %v463
    %v502 = vpop.f32.mrb[0].mxu0
    %v503 = vadd.f32 %v67, %v502
    %v504 = vpop.f32.mrb[0].mxu0
    %v505 = vpop.f32.mrb[0].mxu0
    %v506 = vpop.f32.mrb[0].mxu0
    %507 = vdwg.mxu0
    %v508 = vsel %vm285, %v453, -inf
    %509 = vmax.xlane.f32.xlu0 %v508
    %v510 = vpop.xlane.xlu0 %509
    %v511 = vsel %vm285, %v503, -inf
    %512 = vmax.xlane.f32.xlu0 %v511
    %v513 = vpop.xlane.xlu0 %512
    %v514 = vsub.f32 %v453, %v510
    %v515 = vsub.f32 %v503, %v513
    %v516 = vmul.f32 %v514, 1.442695
    %v517 = vpow.pop %v516
    %v518 = vmul.f32 %v515, 1.442695
    %v519 = vpow.pop %v518
    %v520 = vsel %vm285, %v517, 0.0
    %521 = vadd.xlane.f32.xlu0 %v520
    %v522 = vpop.xlane.xlu0 %521
    %v523 = vsel %vm285, %v519, 0.0
    %524 = vadd.xlane.f32.xlu0 %v523
    %v525 = vpop.xlane.xlu0 %524
    %v526 = vrcp.pop %v522
    %v527 = vrcp.pop %v525
    %v528 = vmul.f32 %v517, %v526
    %v529 = vmul.f32 %v519, %v527
    %v530 = vpack.c.bf16 %v528, %v528
    %v531 = vpack.c.bf16 %v529, %v529
    %532 = vrot.lane.b32.xlu0 %v186, 48
    %v533 = vpop.permute.xlu0 %532
    %v535 = vsel %vm285, %v530, 0
    %v538 = vsel %vm315, %v533, 0
    %540 = vmatprep.subr.bf16.mxu0 0
    %541 = vmatpush1.bf16.msra.mxu0 %v538
    %542 = vmatprep.subr.bf16.mxu0 0
    %543 = vmatpush1.bf16.msra.mxu0 0
    %544 = vmatprep.subr.bf16.mxu0 0
    %545 = vmatpush1.bf16.msra.mxu0 0
    %546 = vmatprep.subr.bf16.mxu0 0
    %547 = vmatpush1.bf16.msra.mxu0 0
    %548 = vmatprep.subr.bf16.mxu0 0
    %549 = vmatpush1.bf16.msra.mxu0 0
    %550 = vmatprep.subr.bf16.mxu0 0
    %551 = vmatpush1.bf16.msra.mxu0 0
    %552 = vmatprep.subr.bf16.mxu0 0
    %553 = vmatpush1.bf16.msra.mxu0 0
    %554 = vmatprep.subr.bf16.mxu0 0
    %555 = vmatpush1.bf16.msra.mxu0 0
    %556 = vmatprep.subr.bf16.mxu0 0
    %557 = vmatpush1.bf16.msra.mxu0 0
    %558 = vmatprep.subr.bf16.mxu0 0
    %559 = vmatpush1.bf16.msra.mxu0 0
    %560 = vmatprep.subr.bf16.mxu0 0
    %561 = vmatpush1.bf16.msra.mxu0 0
    %562 = vmatprep.subr.bf16.mxu0 0
    %563 = vmatpush1.bf16.msra.mxu0 0
    %564 = vmatprep.subr.bf16.mxu0 0
    %565 = vmatpush1.bf16.msra.mxu0 0
    %566 = vmatprep.subr.bf16.mxu0 0
    %567 = vmatpush1.bf16.msra.mxu0 0
    %568 = vmatprep.subr.bf16.mxu0 0
    %569 = vmatpush1.bf16.msra.mxu0 0
    %570 = vmatprep.subr.bf16.mxu0 0
    %571 = vmatpush1.bf16.msra.mxu0 0
    %572 = vmatprep.mubr.bf16.mxu0 0
    %573 = vmatmul.mubr.bf16.gmra.mrb[0].mxu0 %v535
    %v574 = vpop.f32.mrb[0].mxu0
    %v575 = vadd.f32 0.0, %v574
    %v576 = vpop.f32.mrb[0].mxu0
    %v577 = vpop.f32.mrb[0].mxu0
    %v578 = vpop.f32.mrb[0].mxu0
    %579 = vdwg.mxu0
    %580 = vrot.lane.b32.xlu0 %v187, 48
    %v581 = vpop.permute.xlu0 %580
    %v583 = vsel %vm285, %v531, 0
    %v586 = vsel %vm315, %v581, 0
    %588 = vmatprep.subr.bf16.mxu0 0
    %589 = vmatpush1.bf16.msra.mxu0 %v586
    %590 = vmatprep.subr.bf16.mxu0 0
    %591 = vmatpush1.bf16.msra.mxu0 0
    %592 = vmatprep.subr.bf16.mxu0 0
    %593 = vmatpush1.bf16.msra.mxu0 0
    %594 = vmatprep.subr.bf16.mxu0 0
    %595 = vmatpush1.bf16.msra.mxu0 0
    %596 = vmatprep.subr.bf16.mxu0 0
    %597 = vmatpush1.bf16.msra.mxu0 0
    %598 = vmatprep.subr.bf16.mxu0 0
    %599 = vmatpush1.bf16.msra.mxu0 0
    %600 = vmatprep.subr.bf16.mxu0 0
    %601 = vmatpush1.bf16.msra.mxu0 0
    %602 = vmatprep.subr.bf16.mxu0 0
    %603 = vmatpush1.bf16.msra.mxu0 0
    %604 = vmatprep.subr.bf16.mxu0 0
    %605 = vmatpush1.bf16.msra.mxu0 0
    %606 = vmatprep.subr.bf16.mxu0 0
    %607 = vmatpush1.bf16.msra.mxu0 0
    %608 = vmatprep.subr.bf16.mxu0 0
    %609 = vmatpush1.bf16.msra.mxu0 0
    %610 = vmatprep.subr.bf16.mxu0 0
    %611 = vmatpush1.bf16.msra.mxu0 0
    %612 = vmatprep.subr.bf16.mxu0 0
    %613 = vmatpush1.bf16.msra.mxu0 0
    %614 = vmatprep.subr.bf16.mxu0 0
    %615 = vmatpush1.bf16.msra.mxu0 0
    %616 = vmatprep.subr.bf16.mxu0 0
    %617 = vmatpush1.bf16.msra.mxu0 0
    %618 = vmatprep.subr.bf16.mxu0 0
    %619 = vmatpush1.bf16.msra.mxu0 0
    %620 = vmatprep.mubr.bf16.mxu0 0
    %621 = vmatmul.mubr.bf16.gmra.mrb[0].mxu0 %v583
    %v622 = vpop.f32.mrb[0].mxu0
    %v623 = vadd.f32 0.0, %v622
    %v624 = vpop.f32.mrb[0].mxu0
    %v625 = vpop.f32.mrb[0].mxu0
    %v626 = vpop.f32.mrb[0].mxu0
    %627 = vdwg.mxu0
    %v628 = vpack.c.bf16 %v623, %v575
    %v631 = vunpack.c.l.b16 %v181
    %v632 = vunpack.c.l.b16 %v182
    %v633 = vpack.c.b16 %v632, %v631
    %v636 = vsel %vm190, %v628, 0
    %638 = vmatprep.subr.bf16.mxu0 0
    %639 = vmatpush1.bf16.msra.mxu0 %v633
    %640 = vmatprep.subr.bf16.mxu0 0
    %641 = vmatpush1.bf16.msra.mxu0 0
    %642 = vmatprep.subr.bf16.mxu0 0
    %643 = vmatpush1.bf16.msra.mxu0 0
    %644 = vmatprep.subr.bf16.mxu0 0
    %645 = vmatpush1.bf16.msra.mxu0 0
    %646 = vmatprep.subr.bf16.mxu0 0
    %647 = vmatpush1.bf16.msra.mxu0 0
    %648 = vmatprep.subr.bf16.mxu0 0
    %649 = vmatpush1.bf16.msra.mxu0 0
    %650 = vmatprep.subr.bf16.mxu0 0
    %651 = vmatpush1.bf16.msra.mxu0 0
    %652 = vmatprep.subr.bf16.mxu0 0
    %653 = vmatpush1.bf16.msra.mxu0 0
    %654 = vmatprep.subr.bf16.mxu0 0
    %655 = vmatpush1.bf16.msra.mxu0 0
    %656 = vmatprep.subr.bf16.mxu0 0
    %657 = vmatpush1.bf16.msra.mxu0 0
    %658 = vmatprep.subr.bf16.mxu0 0
    %659 = vmatpush1.bf16.msra.mxu0 0
    %660 = vmatprep.subr.bf16.mxu0 0
    %661 = vmatpush1.bf16.msra.mxu0 0
    %662 = vmatprep.subr.bf16.mxu0 0
    %663 = vmatpush1.bf16.msra.mxu0 0
    %664 = vmatprep.subr.bf16.mxu0 0
    %665 = vmatpush1.bf16.msra.mxu0 0
    %666 = vmatprep.subr.bf16.mxu0 0
    %667 = vmatpush1.bf16.msra.mxu0 0
    %668 = vmatprep.subr.bf16.mxu0 0
    %669 = vmatpush1.bf16.msra.mxu0 0
    %670 = vmatprep.mubr.bf16.mxu0 0
    %671 = vmatmul.mubr.bf16.gmra.mrb[0].mxu0 %v636
    %v672 = vpop.f32.mrb[0].mxu0
    %v673 = vadd.f32 0.0, %v672
    %v674 = vpop.f32.mrb[0].mxu0
    %v675 = vpop.f32.mrb[0].mxu0
    %v676 = vadd.f32 0.0, %v675
    %v677 = vpop.f32.mrb[0].mxu0
    %678 = vdwg.mxu0
    %v681 = vunpack.c.l.b16 %v179
    %v682 = vunpack.c.l.b16 %v180
    %v683 = vpack.c.b16 %v682, %v681
    %v686 = vsel %vm190, %v407, 0
    %688 = vmatprep.subr.bf16.mxu0 0
    %689 = vmatpush1.bf16.msra.mxu0 %v683
    %690 = vmatprep.subr.bf16.mxu0 0
    %691 = vmatpush1.bf16.msra.mxu0 0
    %692 = vmatprep.subr.bf16.mxu0 0
    %693 = vmatpush1.bf16.msra.mxu0 0
    %694 = vmatprep.subr.bf16.mxu0 0
    %695 = vmatpush1.bf16.msra.mxu0 0
    %696 = vmatprep.subr.bf16.mxu0 0
    %697 = vmatpush1.bf16.msra.mxu0 0
    %698 = vmatprep.subr.bf16.mxu0 0
    %699 = vmatpush1.bf16.msra.mxu0 0
    %700 = vmatprep.subr.bf16.mxu0 0
    %701 = vmatpush1.bf16.msra.mxu0 0
    %702 = vmatprep.subr.bf16.mxu0 0
    %703 = vmatpush1.bf16.msra.mxu0 0
    %704 = vmatprep.subr.bf16.mxu0 0
    %705 = vmatpush1.bf16.msra.mxu0 0
    %706 = vmatprep.subr.bf16.mxu0 0
    %707 = vmatpush1.bf16.msra.mxu0 0
    %708 = vmatprep.subr.bf16.mxu0 0
    %709 = vmatpush1.bf16.msra.mxu0 0
    %710 = vmatprep.subr.bf16.mxu0 0
    %711 = vmatpush1.bf16.msra.mxu0 0
    %712 = vmatprep.subr.bf16.mxu0 0
    %713 = vmatpush1.bf16.msra.mxu0 0
    %714 = vmatprep.subr.bf16.mxu0 0
    %715 = vmatpush1.bf16.msra.mxu0 0
    %716 = vmatprep.subr.bf16.mxu0 0
    %717 = vmatpush1.bf16.msra.mxu0 0
    %718 = vmatprep.subr.bf16.mxu0 0
    %719 = vmatpush1.bf16.msra.mxu0 0
    %720 = vmatprep.mubr.bf16.mxu0 0
    %721 = vmatmul.mubr.bf16.gmra.mrb[0].mxu0 %v686
    %v722 = vpop.f32.mrb[0].mxu0
    %v723 = vadd.f32 %v673, %v722
    %v724 = vpop.f32.mrb[0].mxu0
    %v725 = vpop.f32.mrb[0].mxu0
    %v726 = vadd.f32 %v676, %v725
    %v727 = vpop.f32.mrb[0].mxu0
    %728 = vdwg.mxu0
    %v729 = vlaneseq
    %v730 = vshrl.u32 %v729, 7
    %v731 = vsub.s32 0, %v730
    %v732 = vrot.slane %v53, %v731
    %v733 = vadd.f32 %v723, %v732
    %v734 = vadd.f32 %v726, %v732
    %v735 = vadd.f32 %v111, %v733
    %v736 = vadd.f32 %v112, %v734
    %v737 = vld [vmem:[%s7] sm:$0x3]
    %v738 = vsel %vm73, %v735, 0.0
    %739 = vadd.xlane.f32.xlu0 %v738
    %v740 = vpop.xlane.xlu0 %739
    %v741 = vsel %vm73, %v736, 0.0
    %742 = vadd.xlane.f32.xlu0 %v741
    %v743 = vpop.xlane.xlu0 %742
    %v744 = vmul.f32 %v740, %v80
    %v745 = vmul.f32 %v743, %v80
    %v746 = vsub.f32 %v735, %v744
    %v747 = vsub.f32 %v736, %v745
    %v748 = vmul.f32 %v746, %v746
    %v749 = vmul.f32 %v747, %v747
    %v750 = vsel %vm73, %v748, 0.0
    %751 = vadd.xlane.f32.xlu0 %v750
    %v752 = vpop.xlane.xlu0 %751
    %v753 = vsel %vm73, %v749, 0.0
    %754 = vadd.xlane.f32.xlu0 %v753
    %v755 = vpop.xlane.xlu0 %754
    %v756 = vmul.f32 %v752, %v80
    %v757 = vmul.f32 %v755, %v80
    %v758 = vadd.f32 %v756, 1e-12
    %v759 = vadd.f32 %v757, 1e-12
    %v760 = vrsqrt.pop %v758
    %v761 = vrsqrt.pop %v759
    %v762 = vmul.f32 %v746, %v760
    %v763 = vmul.f32 %v747, %v761
    %v764 = vlaneseq
    %v765 = vshrl.u32 %v764, 7
    %v766 = vsub.s32 0, %v765
    %v767 = vrot.slane %v737, %v766
    %v768 = vmul.f32 %v762, %v767
    %v769 = vmul.f32 %v763, %v767
    %v770 = vlaneseq
    %v771 = vshrl.u32 %v770, 7
    %v772 = vsub.s32 1, %v771
    %v773 = vrot.slane %v737, %v772
    %v774 = vadd.f32 %v768, %v773
    %v775 = vadd.f32 %v769, %v773
    %v776 = vpack.c.bf16 %v775, %v774
    %v777 = vld [vmem:[%s8] sm:$0xf]
    %v778 = vld [vmem:[%s8 + $0x4] sm:$0xf]
    %v779 = vld [vmem:[%s8 + $0x8] sm:$0xf]
    %v780 = vld [vmem:[%s8 + $0xc] sm:$0xf]
    %v781 = vlaneseq
    %v782 = vshrl.u32 %v781, 7
    %v783 = vsub.s32 0, %v782
    %v784 = vrot.slane %v54, %v783
    %v789 = vunpack.c.l.b16 %v777
    %v790 = vunpack.c.l.b16 %v778
    %v791 = vunpack.c.l.b16 %v779
    %v792 = vunpack.c.l.b16 %v780
    %v793 = vpack.c.b16 %v790, %v789
    %v794 = vpack.c.b16 %v792, %v791
    %v798 = vsel %vm73, %v776, 0
    %800 = vmatprep.subr.bf16.mxu0 0
    %801 = vmatpush1.bf16.msra.mxu0 %v793
    %802 = vmatprep.subr.bf16.mxu0 0
    %803 = vmatpush1.bf16.msra.mxu0 %v794
    %804 = vmatprep.subr.bf16.mxu0 0
    %805 = vmatpush1.bf16.msra.mxu0 0
    %806 = vmatprep.subr.bf16.mxu0 0
    %807 = vmatpush1.bf16.msra.mxu0 0
    %808 = vmatprep.subr.bf16.mxu0 0
    %809 = vmatpush1.bf16.msra.mxu0 0
    %810 = vmatprep.subr.bf16.mxu0 0
    %811 = vmatpush1.bf16.msra.mxu0 0
    %812 = vmatprep.subr.bf16.mxu0 0
    %813 = vmatpush1.bf16.msra.mxu0 0
    %814 = vmatprep.subr.bf16.mxu0 0
    %815 = vmatpush1.bf16.msra.mxu0 0
    %816 = vmatprep.subr.bf16.mxu0 0
    %817 = vmatpush1.bf16.msra.mxu0 0
    %818 = vmatprep.subr.bf16.mxu0 0
    %819 = vmatpush1.bf16.msra.mxu0 0
    %820 = vmatprep.subr.bf16.mxu0 0
    %821 = vmatpush1.bf16.msra.mxu0 0
    %822 = vmatprep.subr.bf16.mxu0 0
    %823 = vmatpush1.bf16.msra.mxu0 0
    %824 = vmatprep.subr.bf16.mxu0 0
    %825 = vmatpush1.bf16.msra.mxu0 0
    %826 = vmatprep.subr.bf16.mxu0 0
    %827 = vmatpush1.bf16.msra.mxu0 0
    %828 = vmatprep.subr.bf16.mxu0 0
    %829 = vmatpush1.bf16.msra.mxu0 0
    %830 = vmatprep.subr.bf16.mxu0 0
    %831 = vmatpush1.bf16.msra.mxu0 0
    %832 = vmatprep.mubr.bf16.mxu0 0
    %833 = vmatmul.mubr.bf16.gmra.mrb[0].mxu0 %v798
    %v834 = vpop.f32.mrb[0].mxu0
    %v835 = vadd.f32 %v784, %v834
    %v836 = vpop.f32.mrb[0].mxu0
    %v837 = vpop.f32.mrb[0].mxu0
    %v838 = vadd.f32 %v784, %v837
    %v839 = vpop.f32.mrb[0].mxu0
    %840 = vdwg.mxu0
    %v841 = vmul.f32 %v835, 0.5
    %v842 = vmul.f32 %v838, 0.5
    %v843 = vmul.f32 %v835, 0.044715
    %v844 = vmul.f32 %v838, 0.044715
    %v845 = vmul.f32 %v843, %v835
    %v846 = vmul.f32 %v844, %v838
    %v847 = vmul.f32 %v845, %v835
    %v848 = vmul.f32 %v846, %v838
    %v849 = vadd.f32 %v835, %v847
    %v850 = vadd.f32 %v838, %v848
    %v851 = vmul.f32 %v849, 0.7978846
    %v852 = vmul.f32 %v850, 0.7978846
    %v853 = vtanh.pop %v851
    %v854 = vtanh.pop %v852
    %v855 = vadd.f32 %v853, 1.0
    %v856 = vadd.f32 %v854, 1.0
    %v857 = vmul.f32 %v841, %v855
    %v858 = vmul.f32 %v842, %v856
    %v859 = vpack.c.bf16 %v858, %v857
    %v860 = vld [vmem:[%s10] sm:$0xf]
    %v861 = vld [vmem:[%s10 + $0x4] sm:$0xf]
    %v862 = vld [vmem:[%s10 + $0x8] sm:$0xf]
    %v863 = vld [vmem:[%s10 + $0xc] sm:$0xf]
    %v864 = vld [vmem:[%s10 + $0x10] sm:$0xf]
    %v865 = vld [vmem:[%s10 + $0x14] sm:$0xf]
    %v866 = vld [vmem:[%s10 + $0x18] sm:$0xf]
    %v867 = vld [vmem:[%s10 + $0x1c] sm:$0xf]
    %v876 = vunpack.c.l.b16 %v860
    %v877 = vunpack.c.l.b16 %v861
    %v878 = vunpack.c.l.b16 %v862
    %v879 = vunpack.c.l.b16 %v863
    %v880 = vunpack.c.l.b16 %v864
    %v881 = vunpack.c.l.b16 %v865
    %v882 = vunpack.c.l.b16 %v866
    %v883 = vunpack.c.l.b16 %v867
    %v884 = vpack.c.b16 %v877, %v876
    %v885 = vpack.c.b16 %v879, %v878
    %v886 = vpack.c.b16 %v881, %v880
    %v887 = vpack.c.b16 %v883, %v882
    %vm892 = vcmask 523264
    %v894 = vsel %vm892, %v859, 0
    %896 = vmatprep.subr.bf16.mxu0 0
    %897 = vmatpush1.bf16.msra.mxu0 %v884
    %898 = vmatprep.subr.bf16.mxu0 0
    %899 = vmatpush1.bf16.msra.mxu0 %v885
    %900 = vmatprep.subr.bf16.mxu0 0
    %901 = vmatpush1.bf16.msra.mxu0 %v886
    %902 = vmatprep.subr.bf16.mxu0 0
    %903 = vmatpush1.bf16.msra.mxu0 %v887
    %904 = vmatprep.subr.bf16.mxu0 0
    %905 = vmatpush1.bf16.msra.mxu0 0
    %906 = vmatprep.subr.bf16.mxu0 0
    %907 = vmatpush1.bf16.msra.mxu0 0
    %908 = vmatprep.subr.bf16.mxu0 0
    %909 = vmatpush1.bf16.msra.mxu0 0
    %910 = vmatprep.subr.bf16.mxu0 0
    %911 = vmatpush1.bf16.msra.mxu0 0
    %912 = vmatprep.subr.bf16.mxu0 0
    %913 = vmatpush1.bf16.msra.mxu0 0
    %914 = vmatprep.subr.bf16.mxu0 0
    %915 = vmatpush1.bf16.msra.mxu0 0
    %916 = vmatprep.subr.bf16.mxu0 0
    %917 = vmatpush1.bf16.msra.mxu0 0
    %918 = vmatprep.subr.bf16.mxu0 0
    %919 = vmatpush1.bf16.msra.mxu0 0
    %920 = vmatprep.subr.bf16.mxu0 0
    %921 = vmatpush1.bf16.msra.mxu0 0
    %922 = vmatprep.subr.bf16.mxu0 0
    %923 = vmatpush1.bf16.msra.mxu0 0
    %924 = vmatprep.subr.bf16.mxu0 0
    %925 = vmatpush1.bf16.msra.mxu0 0
    %926 = vmatprep.subr.bf16.mxu0 0
    %927 = vmatpush1.bf16.msra.mxu0 0
    %928 = vmatprep.mubr.bf16.mxu0 0
    %929 = vmatmul.mubr.bf16.gmra.mrb[0].mxu0 %v894
    %v930 = vpop.f32.mrb[0].mxu0
    %v931 = vadd.f32 0.0, %v930
    %v932 = vpop.f32.mrb[0].mxu0
    %v933 = vpop.f32.mrb[0].mxu0
    %v934 = vadd.f32 0.0, %v933
    %v935 = vpop.f32.mrb[0].mxu0
    %936 = vdwg.mxu0
    %v937 = vadd.f32 %v774, %v931
    %v938 = vadd.f32 %v775, %v934
    %v939 = vlaneseq
    %v940 = vshrl.u32 %v939, 7
    %v941 = vsub.s32 0, %v940
    %v942 = vrot.slane %v55, %v941
    %v943 = vadd.f32 %v937, %v942
    %v944 = vadd.f32 %v938, %v942
    %v945 = vld [vmem:[%s12] sm:$0x3]
    %v946 = vsel %vm73, %v943, 0.0
    %947 = vadd.xlane.f32.xlu0 %v946
    %v948 = vpop.xlane.xlu0 %947
    %v949 = vsel %vm73, %v944, 0.0
    %950 = vadd.xlane.f32.xlu0 %v949
    %v951 = vpop.xlane.xlu0 %950
    %v952 = vmul.f32 %v948, %v80
    %v953 = vmul.f32 %v951, %v80
    %v954 = vsub.f32 %v943, %v952
    %v955 = vsub.f32 %v944, %v953
    %v956 = vmul.f32 %v954, %v954
    %v957 = vmul.f32 %v955, %v955
    %v958 = vsel %vm73, %v956, 0.0
    %959 = vadd.xlane.f32.xlu0 %v958
    %v960 = vpop.xlane.xlu0 %959
    %v961 = vsel %vm73, %v957, 0.0
    %962 = vadd.xlane.f32.xlu0 %v961
    %v963 = vpop.xlane.xlu0 %962
    %v964 = vmul.f32 %v960, %v80
    %v965 = vmul.f32 %v963, %v80
    %v966 = vadd.f32 %v964, 1e-12
    %v967 = vadd.f32 %v965, 1e-12
    %v968 = vrsqrt.pop %v966
    %v969 = vrsqrt.pop %v967
    %v970 = vmul.f32 %v954, %v968
    %v971 = vmul.f32 %v955, %v969
    %v972 = vlaneseq
    %v973 = vshrl.u32 %v972, 7
    %v974 = vsub.s32 0, %v973
    %v975 = vrot.slane %v945, %v974
    %v976 = vmul.f32 %v970, %v975
    %v977 = vmul.f32 %v971, %v975
    %v978 = vlaneseq
    %v979 = vshrl.u32 %v978, 7
    %v980 = vsub.s32 1, %v979
    %v981 = vrot.slane %v945, %v980
    %v982 = vadd.f32 %v976, %v981
    %v983 = vadd.f32 %v977, %v981
    %v984 = vpack.c.bf16 %v983, %v982
    %s985 = scalar_lea.vmem %s3, 16
    %v986 = vld [vmem:[%s985] sm:$0xf]
    %v987 = vld [vmem:[%s985 + $0x4] sm:$0xf]
    %v988 = vld [vmem:[%s985 + $0x8] sm:$0xf]
    %v989 = vld [vmem:[%s985 + $0xc] sm:$0xf]
    %v990 = vlaneseq
    %v991 = vshrl.u32 %v990, 7
    %v992 = vsub.s32 1, %v991
    %v993 = vrot.slane %v52, %v992
    %v998 = vunpack.c.l.b16 %v986
    %v999 = vunpack.c.l.b16 %v987
    %v1000 = vunpack.c.l.b16 %v988
    %v1001 = vunpack.c.l.b16 %v989
    %v1002 = vpack.c.b16 %v999, %v998
    %v1003 = vpack.c.b16 %v1001, %v1000
    %v1007 = vsel %vm73, %v984, 0
    %1009 = vmatprep.subr.bf16.mxu0 0
    %1010 = vmatpush1.bf16.msra.mxu0 %v1002
    %1011 = vmatprep.subr.bf16.mxu0 0
    %1012 = vmatpush1.bf16.msra.mxu0 %v1003
    %1013 = vmatprep.subr.bf16.mxu0 0
    %1014 = vmatpush1.bf16.msra.mxu0 0
    %1015 = vmatprep.subr.bf16.mxu0 0
    %1016 = vmatpush1.bf16.msra.mxu0 0
    %1017 = vmatprep.subr.bf16.mxu0 0
    %1018 = vmatpush1.bf16.msra.mxu0 0
    %1019 = vmatprep.subr.bf16.mxu0 0
    %1020 = vmatpush1.bf16.msra.mxu0 0
    %1021 = vmatprep.subr.bf16.mxu0 0
    %1022 = vmatpush1.bf16.msra.mxu0 0
    %1023 = vmatprep.subr.bf16.mxu0 0
    %1024 = vmatpush1.bf16.msra.mxu0 0
    %1025 = vmatprep.subr.bf16.mxu0 0
    %1026 = vmatpush1.bf16.msra.mxu0 0
    %1027 = vmatprep.subr.bf16.mxu0 0
    %1028 = vmatpush1.bf16.msra.mxu0 0
    %1029 = vmatprep.subr.bf16.mxu0 0
    %1030 = vmatpush1.bf16.msra.mxu0 0
    %1031 = vmatprep.subr.bf16.mxu0 0
    %1032 = vmatpush1.bf16.msra.mxu0 0
    %1033 = vmatprep.subr.bf16.mxu0 0
    %1034 = vmatpush1.bf16.msra.mxu0 0
    %1035 = vmatprep.subr.bf16.mxu0 0
    %1036 = vmatpush1.bf16.msra.mxu0 0
    %1037 = vmatprep.subr.bf16.mxu0 0
    %1038 = vmatpush1.bf16.msra.mxu0 0
    %1039 = vmatprep.subr.bf16.mxu0 0
    %1040 = vmatpush1.bf16.msra.mxu0 0
    %1041 = vmatprep.mubr.bf16.mxu0 0
    %1042 = vmatmul.mubr.bf16.gmra.mrb[0].mxu0 %v1007
    %v1043 = vpop.f32.mrb[0].mxu0
    %v1044 = vadd.f32 %v993, %v1043
    %v1045 = vpop.f32.mrb[0].mxu0
    %v1046 = vpop.f32.mrb[0].mxu0
    %v1047 = vadd.f32 %v993, %v1046
    %v1048 = vpop.f32.mrb[0].mxu0
    %1049 = vdwg.mxu0
    %v1050 = vpack.c.bf16 %v1047, %v1044
    %s1051 = scalar_lea.vmem %s5, 16
    %v1052 = vld [vmem:[%s1051] sm:$0xf]
    %v1053 = vld [vmem:[%s1051 + $0x4] sm:$0xf]
    %v1054 = vld [vmem:[%s1051 + $0x8] sm:$0xf]
    %v1055 = vld [vmem:[%s1051 + $0xc] sm:$0xf]
    %v1057 = vunpack.c.l.b16 %v1050
    %v1058 = vunpack.c.h.b16 %v1050
    %v1059 = vpack.c.b16 %v1057, %v1057
    %v1060 = vpack.c.b16 %v1058, %v1058
    %1061 = vrot.lane.b32.xlu0 %v1059, 96
    %v1062 = vpop.permute.xlu0 %1061
    %v1064 = vsel %vm190, %v1059, 0
    %v1067 = vsel %vm190, %v1062, 0
    %1069 = vmatprep.subr.bf16.mxu0 0
    %1070 = vmatpush1.bf16.xpose.msra.mxu0 %v1067
    %1071 = vmatprep.subr.bf16.mxu0 0
    %1072 = vmatpush1.bf16.xpose.msra.mxu0 0
    %1073 = vmatprep.subr.bf16.mxu0 0
    %1074 = vmatpush1.bf16.xpose.msra.mxu0 0
    %1075 = vmatprep.subr.bf16.mxu0 0
    %1076 = vmatpush1.bf16.xpose.msra.mxu0 0
    %1077 = vmatprep.subr.bf16.mxu0 0
    %1078 = vmatpush1.bf16.xpose.msra.mxu0 0
    %1079 = vmatprep.subr.bf16.mxu0 0
    %1080 = vmatpush1.bf16.xpose.msra.mxu0 0
    %1081 = vmatprep.subr.bf16.mxu0 0
    %1082 = vmatpush1.bf16.xpose.msra.mxu0 0
    %1083 = vmatprep.subr.bf16.mxu0 0
    %1084 = vmatpush1.bf16.xpose.msra.mxu0 0
    %1085 = vmatprep.subr.bf16.mxu0 0
    %1086 = vmatpush1.bf16.xpose.msra.mxu0 0
    %1087 = vmatprep.subr.bf16.mxu0 0
    %1088 = vmatpush1.bf16.xpose.msra.mxu0 0
    %1089 = vmatprep.subr.bf16.mxu0 0
    %1090 = vmatpush1.bf16.xpose.msra.mxu0 0
    %1091 = vmatprep.subr.bf16.mxu0 0
    %1092 = vmatpush1.bf16.xpose.msra.mxu0 0
    %1093 = vmatprep.subr.bf16.mxu0 0
    %1094 = vmatpush1.bf16.xpose.msra.mxu0 0
    %1095 = vmatprep.subr.bf16.mxu0 0
    %1096 = vmatpush1.bf16.xpose.msra.mxu0 0
    %1097 = vmatprep.subr.bf16.mxu0 0
    %1098 = vmatpush1.bf16.xpose.msra.mxu0 0
    %1099 = vmatprep.subr.bf16.mxu0 0
    %1100 = vmatpush1.bf16.xpose.msra.mxu0 0
    %1101 = vmatprep.mubr.bf16.mxu0 0
    %1102 = vmatmul.mubr.bf16.gmra.mrb[0].mxu0 %v1064
    %v1103 = vpop.f32.mrb[0].mxu0
    %v1104 = vadd.f32 %v63, %v1103
    %v1105 = vpop.f32.mrb[0].mxu0
    %v1106 = vpop.f32.mrb[0].mxu0
    %v1107 = vpop.f32.mrb[0].mxu0
    %1108 = vdwg.mxu0
    %1109 = vrot.lane.b32.xlu0 %v1060, 96
    %v1110 = vpop.permute.xlu0 %1109
    %v1112 = vsel %vm190, %v1060, 0
    %v1115 = vsel %vm190, %v1110, 0
    %1117 = vmatprep.subr.bf16.mxu0 0
    %1118 = vmatpush1.bf16.xpose.msra.mxu0 %v1115
    %1119 = vmatprep.subr.bf16.mxu0 0
    %1120 = vmatpush1.bf16.xpose.msra.mxu0 0
    %1121 = vmatprep.subr.bf16.mxu0 0
    %1122 = vmatpush1.bf16.xpose.msra.mxu0 0
    %1123 = vmatprep.subr.bf16.mxu0 0
    %1124 = vmatpush1.bf16.xpose.msra.mxu0 0
    %1125 = vmatprep.subr.bf16.mxu0 0
    %1126 = vmatpush1.bf16.xpose.msra.mxu0 0
    %1127 = vmatprep.subr.bf16.mxu0 0
    %1128 = vmatpush1.bf16.xpose.msra.mxu0 0
    %1129 = vmatprep.subr.bf16.mxu0 0
    %1130 = vmatpush1.bf16.xpose.msra.mxu0 0
    %1131 = vmatprep.subr.bf16.mxu0 0
    %1132 = vmatpush1.bf16.xpose.msra.mxu0 0
    %1133 = vmatprep.subr.bf16.mxu0 0
    %1134 = vmatpush1.bf16.xpose.msra.mxu0 0
    %1135 = vmatprep.subr.bf16.mxu0 0
    %1136 = vmatpush1.bf16.xpose.msra.mxu0 0
    %1137 = vmatprep.subr.bf16.mxu0 0
    %1138 = vmatpush1.bf16.xpose.msra.mxu0 0
    %1139 = vmatprep.subr.bf16.mxu0 0
    %1140 = vmatpush1.bf16.xpose.msra.mxu0 0
    %1141 = vmatprep.subr.bf16.mxu0 0
    %1142 = vmatpush1.bf16.xpose.msra.mxu0 0
    %1143 = vmatprep.subr.bf16.mxu0 0
    %1144 = vmatpush1.bf16.xpose.msra.mxu0 0
    %1145 = vmatprep.subr.bf16.mxu0 0
    %1146 = vmatpush1.bf16.xpose.msra.mxu0 0
    %1147 = vmatprep.subr.bf16.mxu0 0
    %1148 = vmatpush1.bf16.xpose.msra.mxu0 0
    %1149 = vmatprep.mubr.bf16.mxu0 0
    %1150 = vmatmul.mubr.bf16.gmra.mrb[0].mxu0 %v1112
    %v1151 = vpop.f32.mrb[0].mxu0
    %v1152 = vadd.f32 %v67, %v1151
    %v1153 = vpop.f32.mrb[0].mxu0
    %v1154 = vpop.f32.mrb[0].mxu0
    %v1155 = vpop.f32.mrb[0].mxu0
    %1156 = vdwg.mxu0
    %v1157 = vsel %vm285, %v1104, -inf
    %1158 = vmax.xlane.f32.xlu0 %v1157
    %v1159 = vpop.xlane.xlu0 %1158
    %v1160 = vsel %vm285, %v1152, -inf
    %1161 = vmax.xlane.f32.xlu0 %v1160
    %v1162 = vpop.xlane.xlu0 %1161
    %v1163 = vsub.f32 %v1104, %v1159
    %v1164 = vsub.f32 %v1152, %v1162
    %v1165 = vmul.f32 %v1163, 1.442695
    %v1166 = vpow.pop %v1165
    %v1167 = vmul.f32 %v1164, 1.442695
    %v1168 = vpow.pop %v1167
    %v1169 = vsel %vm285, %v1166, 0.0
    %1170 = vadd.xlane.f32.xlu0 %v1169
    %v1171 = vpop.xlane.xlu0 %1170
    %v1172 = vsel %vm285, %v1168, 0.0
    %1173 = vadd.xlane.f32.xlu0 %v1172
    %v1174 = vpop.xlane.xlu0 %1173
    %v1175 = vrcp.pop %v1171
    %v1176 = vrcp.pop %v1174
    %v1177 = vmul.f32 %v1166, %v1175
    %v1178 = vmul.f32 %v1168, %v1176
    %v1179 = vpack.c.bf16 %v1177, %v1177
    %v1180 = vpack.c.bf16 %v1178, %v1178
    %1181 = vrot.lane.b32.xlu0 %v1059, 64
    %v1182 = vpop.permute.xlu0 %1181
    %v1184 = vsel %vm285, %v1179, 0
    %v1187 = vsel %vm315, %v1182, 0
    %1189 = vmatprep.subr.bf16.mxu0 0
    %1190 = vmatpush1.bf16.msra.mxu0 %v1187
    %1191 = vmatprep.subr.bf16.mxu0 0
    %1192 = vmatpush1.bf16.msra.mxu0 0
    %1193 = vmatprep.subr.bf16.mxu0 0
    %1194 = vmatpush1.bf16.msra.mxu0 0
    %1195 = vmatprep.subr.bf16.mxu0 0
    %1196 = vmatpush1.bf16.msra.mxu0 0
    %1197 = vmatprep.subr.bf16.mxu0 0
    %1198 = vmatpush1.bf16.msra.mxu0 0
    %1199 = vmatprep.subr.bf16.mxu0 0
    %1200 = vmatpush1.bf16.msra.mxu0 0
    %1201 = vmatprep.subr.bf16.mxu0 0
    %1202 = vmatpush1.bf16.msra.mxu0 0
    %1203 = vmatprep.subr.bf16.mxu0 0
    %1204 = vmatpush1.bf16.msra.mxu0 0
    %1205 = vmatprep.subr.bf16.mxu0 0
    %1206 = vmatpush1.bf16.msra.mxu0 0
    %1207 = vmatprep.subr.bf16.mxu0 0
    %1208 = vmatpush1.bf16.msra.mxu0 0
    %1209 = vmatprep.subr.bf16.mxu0 0
    %1210 = vmatpush1.bf16.msra.mxu0 0
    %1211 = vmatprep.subr.bf16.mxu0 0
    %1212 = vmatpush1.bf16.msra.mxu0 0
    %1213 = vmatprep.subr.bf16.mxu0 0
    %1214 = vmatpush1.bf16.msra.mxu0 0
    %1215 = vmatprep.subr.bf16.mxu0 0
    %1216 = vmatpush1.bf16.msra.mxu0 0
    %1217 = vmatprep.subr.bf16.mxu0 0
    %1218 = vmatpush1.bf16.msra.mxu0 0
    %1219 = vmatprep.subr.bf16.mxu0 0
    %1220 = vmatpush1.bf16.msra.mxu0 0
    %1221 = vmatprep.mubr.bf16.mxu0 0
    %1222 = vmatmul.mubr.bf16.gmra.mrb[0].mxu0 %v1184
    %v1223 = vpop.f32.mrb[0].mxu0
    %v1224 = vadd.f32 0.0, %v1223
    %v1225 = vpop.f32.mrb[0].mxu0
    %v1226 = vpop.f32.mrb[0].mxu0
    %v1227 = vpop.f32.mrb[0].mxu0
    %1228 = vdwg.mxu0
    %1229 = vrot.lane.b32.xlu0 %v1060, 64
    %v1230 = vpop.permute.xlu0 %1229
    %v1232 = vsel %vm285, %v1180, 0
    %v1235 = vsel %vm315, %v1230, 0
    %1237 = vmatprep.subr.bf16.mxu0 0
    %1238 = vmatpush1.bf16.msra.mxu0 %v1235
    %1239 = vmatprep.subr.bf16.mxu0 0
    %1240 = vmatpush1.bf16.msra.mxu0 0
    %1241 = vmatprep.subr.bf16.mxu0 0
    %1242 = vmatpush1.bf16.msra.mxu0 0
    %1243 = vmatprep.subr.bf16.mxu0 0
    %1244 = vmatpush1.bf16.msra.mxu0 0
    %1245 = vmatprep.subr.bf16.mxu0 0
    %1246 = vmatpush1.bf16.msra.mxu0 0
    %1247 = vmatprep.subr.bf16.mxu0 0
    %1248 = vmatpush1.bf16.msra.mxu0 0
    %1249 = vmatprep.subr.bf16.mxu0 0
    %1250 = vmatpush1.bf16.msra.mxu0 0
    %1251 = vmatprep.subr.bf16.mxu0 0
    %1252 = vmatpush1.bf16.msra.mxu0 0
    %1253 = vmatprep.subr.bf16.mxu0 0
    %1254 = vmatpush1.bf16.msra.mxu0 0
    %1255 = vmatprep.subr.bf16.mxu0 0
    %1256 = vmatpush1.bf16.msra.mxu0 0
    %1257 = vmatprep.subr.bf16.mxu0 0
    %1258 = vmatpush1.bf16.msra.mxu0 0
    %1259 = vmatprep.subr.bf16.mxu0 0
    %1260 = vmatpush1.bf16.msra.mxu0 0
    %1261 = vmatprep.subr.bf16.mxu0 0
    %1262 = vmatpush1.bf16.msra.mxu0 0
    %1263 = vmatprep.subr.bf16.mxu0 0
    %1264 = vmatpush1.bf16.msra.mxu0 0
    %1265 = vmatprep.subr.bf16.mxu0 0
    %1266 = vmatpush1.bf16.msra.mxu0 0
    %1267 = vmatprep.subr.bf16.mxu0 0
    %1268 = vmatpush1.bf16.msra.mxu0 0
    %1269 = vmatprep.mubr.bf16.mxu0 0
    %1270 = vmatmul.mubr.bf16.gmra.mrb[0].mxu0 %v1232
    %v1271 = vpop.f32.mrb[0].mxu0
    %v1272 = vadd.f32 0.0, %v1271
    %v1273 = vpop.f32.mrb[0].mxu0
    %v1274 = vpop.f32.mrb[0].mxu0
    %v1275 = vpop.f32.mrb[0].mxu0
    %1276 = vdwg.mxu0
    %v1277 = vpack.c.bf16 %v1272, %v1224
    %1278 = vrot.lane.b32.xlu0 %v1059, 112
    %v1279 = vpop.permute.xlu0 %1278
    %1280 = vrot.lane.b32.xlu0 %v1059, 80
    %v1281 = vpop.permute.xlu0 %1280
    %v1283 = vsel %vm190, %v1279, 0
    %v1286 = vsel %vm190, %v1281, 0
    %1288 = vmatprep.subr.bf16.mxu0 0
    %1289 = vmatpush1.bf16.xpose.msra.mxu0 %v1286
    %1290 = vmatprep.subr.bf16.mxu0 0
    %1291 = vmatpush1.bf16.xpose.msra.mxu0 0
    %1292 = vmatprep.subr.bf16.mxu0 0
    %1293 = vmatpush1.bf16.xpose.msra.mxu0 0
    %1294 = vmatprep.subr.bf16.mxu0 0
    %1295 = vmatpush1.bf16.xpose.msra.mxu0 0
    %1296 = vmatprep.subr.bf16.mxu0 0
    %1297 = vmatpush1.bf16.xpose.msra.mxu0 0
    %1298 = vmatprep.subr.bf16.mxu0 0
    %1299 = vmatpush1.bf16.xpose.msra.mxu0 0
    %1300 = vmatprep.subr.bf16.mxu0 0
    %1301 = vmatpush1.bf16.xpose.msra.mxu0 0
    %1302 = vmatprep.subr.bf16.mxu0 0
    %1303 = vmatpush1.bf16.xpose.msra.mxu0 0
    %1304 = vmatprep.subr.bf16.mxu0 0
    %1305 = vmatpush1.bf16.xpose.msra.mxu0 0
    %1306 = vmatprep.subr.bf16.mxu0 0
    %1307 = vmatpush1.bf16.xpose.msra.mxu0 0
    %1308 = vmatprep.subr.bf16.mxu0 0
    %1309 = vmatpush1.bf16.xpose.msra.mxu0 0
    %1310 = vmatprep.subr.bf16.mxu0 0
    %1311 = vmatpush1.bf16.xpose.msra.mxu0 0
    %1312 = vmatprep.subr.bf16.mxu0 0
    %1313 = vmatpush1.bf16.xpose.msra.mxu0 0
    %1314 = vmatprep.subr.bf16.mxu0 0
    %1315 = vmatpush1.bf16.xpose.msra.mxu0 0
    %1316 = vmatprep.subr.bf16.mxu0 0
    %1317 = vmatpush1.bf16.xpose.msra.mxu0 0
    %1318 = vmatprep.subr.bf16.mxu0 0
    %1319 = vmatpush1.bf16.xpose.msra.mxu0 0
    %1320 = vmatprep.mubr.bf16.mxu0 0
    %1321 = vmatmul.mubr.bf16.gmra.mrb[0].mxu0 %v1283
    %v1322 = vpop.f32.mrb[0].mxu0
    %v1323 = vadd.f32 %v63, %v1322
    %v1324 = vpop.f32.mrb[0].mxu0
    %v1325 = vpop.f32.mrb[0].mxu0
    %v1326 = vpop.f32.mrb[0].mxu0
    %1327 = vdwg.mxu0
    %1328 = vrot.lane.b32.xlu0 %v1060, 112
    %v1329 = vpop.permute.xlu0 %1328
    %1330 = vrot.lane.b32.xlu0 %v1060, 80
    %v1331 = vpop.permute.xlu0 %1330
    %v1333 = vsel %vm190, %v1329, 0
    %v1336 = vsel %vm190, %v1331, 0
    %1338 = vmatprep.subr.bf16.mxu0 0
    %1339 = vmatpush1.bf16.xpose.msra.mxu0 %v1336
    %1340 = vmatprep.subr.bf16.mxu0 0
    %1341 = vmatpush1.bf16.xpose.msra.mxu0 0
    %1342 = vmatprep.subr.bf16.mxu0 0
    %1343 = vmatpush1.bf16.xpose.msra.mxu0 0
    %1344 = vmatprep.subr.bf16.mxu0 0
    %1345 = vmatpush1.bf16.xpose.msra.mxu0 0
    %1346 = vmatprep.subr.bf16.mxu0 0
    %1347 = vmatpush1.bf16.xpose.msra.mxu0 0
    %1348 = vmatprep.subr.bf16.mxu0 0
    %1349 = vmatpush1.bf16.xpose.msra.mxu0 0
    %1350 = vmatprep.subr.bf16.mxu0 0
    %1351 = vmatpush1.bf16.xpose.msra.mxu0 0
    %1352 = vmatprep.subr.bf16.mxu0 0
    %1353 = vmatpush1.bf16.xpose.msra.mxu0 0
    %1354 = vmatprep.subr.bf16.mxu0 0
    %1355 = vmatpush1.bf16.xpose.msra.mxu0 0
    %1356 = vmatprep.subr.bf16.mxu0 0
    %1357 = vmatpush1.bf16.xpose.msra.mxu0 0
    %1358 = vmatprep.subr.bf16.mxu0 0
    %1359 = vmatpush1.bf16.xpose.msra.mxu0 0
    %1360 = vmatprep.subr.bf16.mxu0 0
    %1361 = vmatpush1.bf16.xpose.msra.mxu0 0
    %1362 = vmatprep.subr.bf16.mxu0 0
    %1363 = vmatpush1.bf16.xpose.msra.mxu0 0
    %1364 = vmatprep.subr.bf16.mxu0 0
    %1365 = vmatpush1.bf16.xpose.msra.mxu0 0
    %1366 = vmatprep.subr.bf16.mxu0 0
    %1367 = vmatpush1.bf16.xpose.msra.mxu0 0
    %1368 = vmatprep.subr.bf16.mxu0 0
    %1369 = vmatpush1.bf16.xpose.msra.mxu0 0
    %1370 = vmatprep.mubr.bf16.mxu0 0
    %1371 = vmatmul.mubr.bf16.gmra.mrb[0].mxu0 %v1333
    %v1372 = vpop.f32.mrb[0].mxu0
    %v1373 = vadd.f32 %v67, %v1372
    %v1374 = vpop.f32.mrb[0].mxu0
    %v1375 = vpop.f32.mrb[0].mxu0
    %v1376 = vpop.f32.mrb[0].mxu0
    %1377 = vdwg.mxu0
    %v1378 = vsel %vm285, %v1323, -inf
    %1379 = vmax.xlane.f32.xlu0 %v1378
    %v1380 = vpop.xlane.xlu0 %1379
    %v1381 = vsel %vm285, %v1373, -inf
    %1382 = vmax.xlane.f32.xlu0 %v1381
    %v1383 = vpop.xlane.xlu0 %1382
    %v1384 = vsub.f32 %v1323, %v1380
    %v1385 = vsub.f32 %v1373, %v1383
    %v1386 = vmul.f32 %v1384, 1.442695
    %v1387 = vpow.pop %v1386
    %v1388 = vmul.f32 %v1385, 1.442695
    %v1389 = vpow.pop %v1388
    %v1390 = vsel %vm285, %v1387, 0.0
    %1391 = vadd.xlane.f32.xlu0 %v1390
    %v1392 = vpop.xlane.xlu0 %1391
    %v1393 = vsel %vm285, %v1389, 0.0
    %1394 = vadd.xlane.f32.xlu0 %v1393
    %v1395 = vpop.xlane.xlu0 %1394
    %v1396 = vrcp.pop %v1392
    %v1397 = vrcp.pop %v1395
    %v1398 = vmul.f32 %v1387, %v1396
    %v1399 = vmul.f32 %v1389, %v1397
    %v1400 = vpack.c.bf16 %v1398, %v1398
    %v1401 = vpack.c.bf16 %v1399, %v1399
    %1402 = vrot.lane.b32.xlu0 %v1059, 48
    %v1403 = vpop.permute.xlu0 %1402
    %v1405 = vsel %vm285, %v1400, 0
    %v1408 = vsel %vm315, %v1403, 0
    %1410 = vmatprep.subr.bf16.mxu0 0
    %1411 = vmatpush1.bf16.msra.mxu0 %v1408
    %1412 = vmatprep.subr.bf16.mxu0 0
    %1413 = vmatpush1.bf16.msra.mxu0 0
    %1414 = vmatprep.subr.bf16.mxu0 0
    %1415 = vmatpush1.bf16.msra.mxu0 0
    %1416 = vmatprep.subr.bf16.mxu0 0
    %1417 = vmatpush1.bf16.msra.mxu0 0
    %1418 = vmatprep.subr.bf16.mxu0 0
    %1419 = vmatpush1.bf16.msra.mxu0 0
    %1420 = vmatprep.subr.bf16.mxu0 0
    %1421 = vmatpush1.bf16.msra.mxu0 0
    %1422 = vmatprep.subr.bf16.mxu0 0
    %1423 = vmatpush1.bf16.msra.mxu0 0
    %1424 = vmatprep.subr.bf16.mxu0 0
    %1425 = vmatpush1.bf16.msra.mxu0 0
    %1426 = vmatprep.subr.bf16.mxu0 0
    %1427 = vmatpush1.bf16.msra.mxu0 0
    %1428 = vmatprep.subr.bf16.mxu0 0
    %1429 = vmatpush1.bf16.msra.mxu0 0
    %1430 = vmatprep.subr.bf16.mxu0 0
    %1431 = vmatpush1.bf16.msra.mxu0 0
    %1432 = vmatprep.subr.bf16.mxu0 0
    %1433 = vmatpush1.bf16.msra.mxu0 0
    %1434 = vmatprep.subr.bf16.mxu0 0
    %1435 = vmatpush1.bf16.msra.mxu0 0
    %1436 = vmatprep.subr.bf16.mxu0 0
    %1437 = vmatpush1.bf16.msra.mxu0 0
    %1438 = vmatprep.subr.bf16.mxu0 0
    %1439 = vmatpush1.bf16.msra.mxu0 0
    %1440 = vmatprep.subr.bf16.mxu0 0
    %1441 = vmatpush1.bf16.msra.mxu0 0
    %1442 = vmatprep.mubr.bf16.mxu0 0
    %1443 = vmatmul.mubr.bf16.gmra.mrb[0].mxu0 %v1405
    %v1444 = vpop.f32.mrb[0].mxu0
    %v1445 = vadd.f32 0.0, %v1444
    %v1446 = vpop.f32.mrb[0].mxu0
    %v1447 = vpop.f32.mrb[0].mxu0
    %v1448 = vpop.f32.mrb[0].mxu0
    %1449 = vdwg.mxu0
    %1450 = vrot.lane.b32.xlu0 %v1060, 48
    %v1451 = vpop.permute.xlu0 %1450
    %v1453 = vsel %vm285, %v1401, 0
    %v1456 = vsel %vm315, %v1451, 0
    %1458 = vmatprep.subr.bf16.mxu0 0
    %1459 = vmatpush1.bf16.msra.mxu0 %v1456
    %1460 = vmatprep.subr.bf16.mxu0 0
    %1461 = vmatpush1.bf16.msra.mxu0 0
    %1462 = vmatprep.subr.bf16.mxu0 0
    %1463 = vmatpush1.bf16.msra.mxu0 0
    %1464 = vmatprep.subr.bf16.mxu0 0
    %1465 = vmatpush1.bf16.msra.mxu0 0
    %1466 = vmatprep.subr.bf16.mxu0 0
    %1467 = vmatpush1.bf16.msra.mxu0 0
    %1468 = vmatprep.subr.bf16.mxu0 0
    %1469 = vmatpush1.bf16.msra.mxu0 0
    %1470 = vmatprep.subr.bf16.mxu0 0
    %1471 = vmatpush1.bf16.msra.mxu0 0
    %1472 = vmatprep.subr.bf16.mxu0 0
    %1473 = vmatpush1.bf16.msra.mxu0 0
    %1474 = vmatprep.subr.bf16.mxu0 0
    %1475 = vmatpush1.bf16.msra.mxu0 0
    %1476 = vmatprep.subr.bf16.mxu0 0
    %1477 = vmatpush1.bf16.msra.mxu0 0
    %1478 = vmatprep.subr.bf16.mxu0 0
    %1479 = vmatpush1.bf16.msra.mxu0 0
    %1480 = vmatprep.subr.bf16.mxu0 0
    %1481 = vmatpush1.bf16.msra.mxu0 0
    %1482 = vmatprep.subr.bf16.mxu0 0
    %1483 = vmatpush1.bf16.msra.mxu0 0
    %1484 = vmatprep.subr.bf16.mxu0 0
    %1485 = vmatpush1.bf16.msra.mxu0 0
    %1486 = vmatprep.subr.bf16.mxu0 0
    %1487 = vmatpush1.bf16.msra.mxu0 0
    %1488 = vmatprep.subr.bf16.mxu0 0
    %1489 = vmatpush1.bf16.msra.mxu0 0
    %1490 = vmatprep.mubr.bf16.mxu0 0
    %1491 = vmatmul.mubr.bf16.gmra.mrb[0].mxu0 %v1453
    %v1492 = vpop.f32.mrb[0].mxu0
    %v1493 = vadd.f32 0.0, %v1492
    %v1494 = vpop.f32.mrb[0].mxu0
    %v1495 = vpop.f32.mrb[0].mxu0
    %v1496 = vpop.f32.mrb[0].mxu0
    %1497 = vdwg.mxu0
    %v1498 = vpack.c.bf16 %v1493, %v1445
    %v1501 = vunpack.c.l.b16 %v1054
    %v1502 = vunpack.c.l.b16 %v1055
    %v1503 = vpack.c.b16 %v1502, %v1501
    %v1506 = vsel %vm190, %v1498, 0
    %1508 = vmatprep.subr.bf16.mxu0 0
    %1509 = vmatpush1.bf16.msra.mxu0 %v1503
    %1510 = vmatprep.subr.bf16.mxu0 0
    %1511 = vmatpush1.bf16.msra.mxu0 0
    %1512 = vmatprep.subr.bf16.mxu0 0
    %1513 = vmatpush1.bf16.msra.mxu0 0
    %1514 = vmatprep.subr.bf16.mxu0 0
    %1515 = vmatpush1.bf16.msra.mxu0 0
    %1516 = vmatprep.subr.bf16.mxu0 0
    %1517 = vmatpush1.bf16.msra.mxu0 0
    %1518 = vmatprep.subr.bf16.mxu0 0
    %1519 = vmatpush1.bf16.msra.mxu0 0
    %1520 = vmatprep.subr.bf16.mxu0 0
    %1521 = vmatpush1.bf16.msra.mxu0 0
    %1522 = vmatprep.subr.bf16.mxu0 0
    %1523 = vmatpush1.bf16.msra.mxu0 0
    %1524 = vmatprep.subr.bf16.mxu0 0
    %1525 = vmatpush1.bf16.msra.mxu0 0
    %1526 = vmatprep.subr.bf16.mxu0 0
    %1527 = vmatpush1.bf16.msra.mxu0 0
    %1528 = vmatprep.subr.bf16.mxu0 0
    %1529 = vmatpush1.bf16.msra.mxu0 0
    %1530 = vmatprep.subr.bf16.mxu0 0
    %1531 = vmatpush1.bf16.msra.mxu0 0
    %1532 = vmatprep.subr.bf16.mxu0 0
    %1533 = vmatpush1.bf16.msra.mxu0 0
    %1534 = vmatprep.subr.bf16.mxu0 0
    %1535 = vmatpush1.bf16.msra.mxu0 0
    %1536 = vmatprep.subr.bf16.mxu0 0
    %1537 = vmatpush1.bf16.msra.mxu0 0
    %1538 = vmatprep.subr.bf16.mxu0 0
    %1539 = vmatpush1.bf16.msra.mxu0 0
    %1540 = vmatprep.mubr.bf16.mxu0 0
    %1541 = vmatmul.mubr.bf16.gmra.mrb[0].mxu0 %v1506
    %v1542 = vpop.f32.mrb[0].mxu0
    %v1543 = vadd.f32 0.0, %v1542
    %v1544 = vpop.f32.mrb[0].mxu0
    %v1545 = vpop.f32.mrb[0].mxu0
    %v1546 = vadd.f32 0.0, %v1545
    %v1547 = vpop.f32.mrb[0].mxu0
    %1548 = vdwg.mxu0
    %v1551 = vunpack.c.l.b16 %v1052
    %v1552 = vunpack.c.l.b16 %v1053
    %v1553 = vpack.c.b16 %v1552, %v1551
    %v1556 = vsel %vm190, %v1277, 0
    %1558 = vmatprep.subr.bf16.mxu0 0
    %1559 = vmatpush1.bf16.msra.mxu0 %v1553
    %1560 = vmatprep.subr.bf16.mxu0 0
    %1561 = vmatpush1.bf16.msra.mxu0 0
    %1562 = vmatprep.subr.bf16.mxu0 0
    %1563 = vmatpush1.bf16.msra.mxu0 0
    %1564 = vmatprep.subr.bf16.mxu0 0
    %1565 = vmatpush1.bf16.msra.mxu0 0
    %1566 = vmatprep.subr.bf16.mxu0 0
    %1567 = vmatpush1.bf16.msra.mxu0 0
    %1568 = vmatprep.subr.bf16.mxu0 0
    %1569 = vmatpush1.bf16.msra.mxu0 0
    %1570 = vmatprep.subr.bf16.mxu0 0
    %1571 = vmatpush1.bf16.msra.mxu0 0
    %1572 = vmatprep.subr.bf16.mxu0 0
    %1573 = vmatpush1.bf16.msra.mxu0 0
    %1574 = vmatprep.subr.bf16.mxu0 0
    %1575 = vmatpush1.bf16.msra.mxu0 0
    %1576 = vmatprep.subr.bf16.mxu0 0
    %1577 = vmatpush1.bf16.msra.mxu0 0
    %1578 = vmatprep.subr.bf16.mxu0 0
    %1579 = vmatpush1.bf16.msra.mxu0 0
    %1580 = vmatprep.subr.bf16.mxu0 0
    %1581 = vmatpush1.bf16.msra.mxu0 0
    %1582 = vmatprep.subr.bf16.mxu0 0
    %1583 = vmatpush1.bf16.msra.mxu0 0
    %1584 = vmatprep.subr.bf16.mxu0 0
    %1585 = vmatpush1.bf16.msra.mxu0 0
    %1586 = vmatprep.subr.bf16.mxu0 0
    %1587 = vmatpush1.bf16.msra.mxu0 0
    %1588 = vmatprep.subr.bf16.mxu0 0
    %1589 = vmatpush1.bf16.msra.mxu0 0
    %1590 = vmatprep.mubr.bf16.mxu0 0
    %1591 = vmatmul.mubr.bf16.gmra.mrb[0].mxu0 %v1556
    %v1592 = vpop.f32.mrb[0].mxu0
    %v1593 = vadd.f32 %v1543, %v1592
    %v1594 = vpop.f32.mrb[0].mxu0
    %v1595 = vpop.f32.mrb[0].mxu0
    %v1596 = vadd.f32 %v1546, %v1595
    %v1597 = vpop.f32.mrb[0].mxu0
    %1598 = vdwg.mxu0
    %v1599 = vlaneseq
    %v1600 = vshrl.u32 %v1599, 7
    %v1601 = vsub.s32 1, %v1600
    %v1602 = vrot.slane %v53, %v1601
    %v1603 = vadd.f32 %v1593, %v1602
    %v1604 = vadd.f32 %v1596, %v1602
    %v1605 = vadd.f32 %v982, %v1603
    %v1606 = vadd.f32 %v983, %v1604
    %s1607 = scalar_lea.vmem %s7, 2
    %v1608 = vld [vmem:[%s1607] sm:$0x3]
    %v1609 = vsel %vm73, %v1605, 0.0
    %1610 = vadd.xlane.f32.xlu0 %v1609
    %v1611 = vpop.xlane.xlu0 %1610
    %v1612 = vsel %vm73, %v1606, 0.0
    %1613 = vadd.xlane.f32.xlu0 %v1612
    %v1614 = vpop.xlane.xlu0 %1613
    %v1615 = vmul.f32 %v1611, %v80
    %v1616 = vmul.f32 %v1614, %v80
    %v1617 = vsub.f32 %v1605, %v1615
    %v1618 = vsub.f32 %v1606, %v1616
    %v1619 = vmul.f32 %v1617, %v1617
    %v1620 = vmul.f32 %v1618, %v1618
    %v1621 = vsel %vm73, %v1619, 0.0
    %1622 = vadd.xlane.f32.xlu0 %v1621
    %v1623 = vpop.xlane.xlu0 %1622
    %v1624 = vsel %vm73, %v1620, 0.0
    %1625 = vadd.xlane.f32.xlu0 %v1624
    %v1626 = vpop.xlane.xlu0 %1625
    %v1627 = vmul.f32 %v1623, %v80
    %v1628 = vmul.f32 %v1626, %v80
    %v1629 = vadd.f32 %v1627, 1e-12
    %v1630 = vadd.f32 %v1628, 1e-12
    %v1631 = vrsqrt.pop %v1629
    %v1632 = vrsqrt.pop %v1630
    %v1633 = vmul.f32 %v1617, %v1631
    %v1634 = vmul.f32 %v1618, %v1632
    %v1635 = vlaneseq
    %v1636 = vshrl.u32 %v1635, 7
    %v1637 = vsub.s32 0, %v1636
    %v1638 = vrot.slane %v1608, %v1637
    %v1639 = vmul.f32 %v1633, %v1638
    %v1640 = vmul.f32 %v1634, %v1638
    %v1641 = vlaneseq
    %v1642 = vshrl.u32 %v1641, 7
    %v1643 = vsub.s32 1, %v1642
    %v1644 = vrot.slane %v1608, %v1643
    %v1645 = vadd.f32 %v1639, %v1644
    %v1646 = vadd.f32 %v1640, %v1644
    %v1647 = vpack.c.bf16 %v1646, %v1645
    %s1648 = scalar_lea.vmem %s8, 16
    %v1649 = vld [vmem:[%s1648] sm:$0xf]
    %v1650 = vld [vmem:[%s1648 + $0x4] sm:$0xf]
    %v1651 = vld [vmem:[%s1648 + $0x8] sm:$0xf]
    %v1652 = vld [vmem:[%s1648 + $0xc] sm:$0xf]
    %v1653 = vlaneseq
    %v1654 = vshrl.u32 %v1653, 7
    %v1655 = vsub.s32 1, %v1654
    %v1656 = vrot.slane %v54, %v1655
    %v1661 = vunpack.c.l.b16 %v1649
    %v1662 = vunpack.c.l.b16 %v1650
    %v1663 = vunpack.c.l.b16 %v1651
    %v1664 = vunpack.c.l.b16 %v1652
    %v1665 = vpack.c.b16 %v1662, %v1661
    %v1666 = vpack.c.b16 %v1664, %v1663
    %v1670 = vsel %vm73, %v1647, 0
    %1672 = vmatprep.subr.bf16.mxu0 0
    %1673 = vmatpush1.bf16.msra.mxu0 %v1665
    %1674 = vmatprep.subr.bf16.mxu0 0
    %1675 = vmatpush1.bf16.msra.mxu0 %v1666
    %1676 = vmatprep.subr.bf16.mxu0 0
    %1677 = vmatpush1.bf16.msra.mxu0 0
    %1678 = vmatprep.subr.bf16.mxu0 0
    %1679 = vmatpush1.bf16.msra.mxu0 0
    %1680 = vmatprep.subr.bf16.mxu0 0
    %1681 = vmatpush1.bf16.msra.mxu0 0
    %1682 = vmatprep.subr.bf16.mxu0 0
    %1683 = vmatpush1.bf16.msra.mxu0 0
    %1684 = vmatprep.subr.bf16.mxu0 0
    %1685 = vmatpush1.bf16.msra.mxu0 0
    %1686 = vmatprep.subr.bf16.mxu0 0
    %1687 = vmatpush1.bf16.msra.mxu0 0
    %1688 = vmatprep.subr.bf16.mxu0 0
    %1689 = vmatpush1.bf16.msra.mxu0 0
    %1690 = vmatprep.subr.bf16.mxu0 0
    %1691 = vmatpush1.bf16.msra.mxu0 0
    %1692 = vmatprep.subr.bf16.mxu0 0
    %1693 = vmatpush1.bf16.msra.mxu0 0
    %1694 = vmatprep.subr.bf16.mxu0 0
    %1695 = vmatpush1.bf16.msra.mxu0 0
    %1696 = vmatprep.subr.bf16.mxu0 0
    %1697 = vmatpush1.bf16.msra.mxu0 0
    %1698 = vmatprep.subr.bf16.mxu0 0
    %1699 = vmatpush1.bf16.msra.mxu0 0
    %1700 = vmatprep.subr.bf16.mxu0 0
    %1701 = vmatpush1.bf16.msra.mxu0 0
    %1702 = vmatprep.subr.bf16.mxu0 0
    %1703 = vmatpush1.bf16.msra.mxu0 0
    %1704 = vmatprep.mubr.bf16.mxu0 0
    %1705 = vmatmul.mubr.bf16.gmra.mrb[0].mxu0 %v1670
    %v1706 = vpop.f32.mrb[0].mxu0
    %v1707 = vadd.f32 %v1656, %v1706
    %v1708 = vpop.f32.mrb[0].mxu0
    %v1709 = vpop.f32.mrb[0].mxu0
    %v1710 = vadd.f32 %v1656, %v1709
    %v1711 = vpop.f32.mrb[0].mxu0
    %1712 = vdwg.mxu0
    %v1713 = vmul.f32 %v1707, 0.5
    %v1714 = vmul.f32 %v1710, 0.5
    %v1715 = vmul.f32 %v1707, 0.044715
    %v1716 = vmul.f32 %v1710, 0.044715
    %v1717 = vmul.f32 %v1715, %v1707
    %v1718 = vmul.f32 %v1716, %v1710
    %v1719 = vmul.f32 %v1717, %v1707
    %v1720 = vmul.f32 %v1718, %v1710
    %v1721 = vadd.f32 %v1707, %v1719
    %v1722 = vadd.f32 %v1710, %v1720
    %v1723 = vmul.f32 %v1721, 0.7978846
    %v1724 = vmul.f32 %v1722, 0.7978846
    %v1725 = vtanh.pop %v1723
    %v1726 = vtanh.pop %v1724
    %v1727 = vadd.f32 %v1725, 1.0
    %v1728 = vadd.f32 %v1726, 1.0
    %v1729 = vmul.f32 %v1713, %v1727
    %v1730 = vmul.f32 %v1714, %v1728
    %v1731 = vpack.c.bf16 %v1730, %v1729
    %s1732 = scalar_lea.vmem %s10, 32
    %v1733 = vld [vmem:[%s1732] sm:$0xf]
    %v1734 = vld [vmem:[%s1732 + $0x4] sm:$0xf]
    %v1735 = vld [vmem:[%s1732 + $0x8] sm:$0xf]
    %v1736 = vld [vmem:[%s1732 + $0xc] sm:$0xf]
    %v1737 = vld [vmem:[%s1732 + $0x10] sm:$0xf]
    %v1738 = vld [vmem:[%s1732 + $0x14] sm:$0xf]
    %v1739 = vld [vmem:[%s1732 + $0x18] sm:$0xf]
    %v1740 = vld [vmem:[%s1732 + $0x1c] sm:$0xf]
    %v1749 = vunpack.c.l.b16 %v1733
    %v1750 = vunpack.c.l.b16 %v1734
    %v1751 = vunpack.c.l.b16 %v1735
    %v1752 = vunpack.c.l.b16 %v1736
    %v1753 = vunpack.c.l.b16 %v1737
    %v1754 = vunpack.c.l.b16 %v1738
    %v1755 = vunpack.c.l.b16 %v1739
    %v1756 = vunpack.c.l.b16 %v1740
    %v1757 = vpack.c.b16 %v1750, %v1749
    %v1758 = vpack.c.b16 %v1752, %v1751
    %v1759 = vpack.c.b16 %v1754, %v1753
    %v1760 = vpack.c.b16 %v1756, %v1755
    %v1766 = vsel %vm892, %v1731, 0
    %1768 = vmatprep.subr.bf16.mxu0 0
    %1769 = vmatpush1.bf16.msra.mxu0 %v1757
    %1770 = vmatprep.subr.bf16.mxu0 0
    %1771 = vmatpush1.bf16.msra.mxu0 %v1758
    %1772 = vmatprep.subr.bf16.mxu0 0
    %1773 = vmatpush1.bf16.msra.mxu0 %v1759
    %1774 = vmatprep.subr.bf16.mxu0 0
    %1775 = vmatpush1.bf16.msra.mxu0 %v1760
    %1776 = vmatprep.subr.bf16.mxu0 0
    %1777 = vmatpush1.bf16.msra.mxu0 0
    %1778 = vmatprep.subr.bf16.mxu0 0
    %1779 = vmatpush1.bf16.msra.mxu0 0
    %1780 = vmatprep.subr.bf16.mxu0 0
    %1781 = vmatpush1.bf16.msra.mxu0 0
    %1782 = vmatprep.subr.bf16.mxu0 0
    %1783 = vmatpush1.bf16.msra.mxu0 0
    %1784 = vmatprep.subr.bf16.mxu0 0
    %1785 = vmatpush1.bf16.msra.mxu0 0
    %1786 = vmatprep.subr.bf16.mxu0 0
    %1787 = vmatpush1.bf16.msra.mxu0 0
    %1788 = vmatprep.subr.bf16.mxu0 0
    %1789 = vmatpush1.bf16.msra.mxu0 0
    %1790 = vmatprep.subr.bf16.mxu0 0
    %1791 = vmatpush1.bf16.msra.mxu0 0
    %1792 = vmatprep.subr.bf16.mxu0 0
    %1793 = vmatpush1.bf16.msra.mxu0 0
    %1794 = vmatprep.subr.bf16.mxu0 0
    %1795 = vmatpush1.bf16.msra.mxu0 0
    %1796 = vmatprep.subr.bf16.mxu0 0
    %1797 = vmatpush1.bf16.msra.mxu0 0
    %1798 = vmatprep.subr.bf16.mxu0 0
    %1799 = vmatpush1.bf16.msra.mxu0 0
    %1800 = vmatprep.mubr.bf16.mxu0 0
    %1801 = vmatmul.mubr.bf16.gmra.mrb[0].mxu0 %v1766
    %v1802 = vpop.f32.mrb[0].mxu0
    %v1803 = vadd.f32 0.0, %v1802
    %v1804 = vpop.f32.mrb[0].mxu0
    %v1805 = vpop.f32.mrb[0].mxu0
    %v1806 = vadd.f32 0.0, %v1805
    %v1807 = vpop.f32.mrb[0].mxu0
    %1808 = vdwg.mxu0
    %v1809 = vadd.f32 %v1645, %v1803
    %v1810 = vadd.f32 %v1646, %v1806
    %v1811 = vlaneseq
    %v1812 = vshrl.u32 %v1811, 7
    %v1813 = vsub.s32 1, %v1812
    %v1814 = vrot.slane %v55, %v1813
    %v1815 = vadd.f32 %v1809, %v1814
    %v1816 = vadd.f32 %v1810, %v1814
    %s1817 = scalar_lea.vmem %s12, 2
    %v1818 = vld [vmem:[%s1817] sm:$0x3]
    %v1819 = vsel %vm73, %v1815, 0.0
    %1820 = vadd.xlane.f32.xlu0 %v1819
    %v1821 = vpop.xlane.xlu0 %1820
    %v1822 = vsel %vm73, %v1816, 0.0
    %1823 = vadd.xlane.f32.xlu0 %v1822
    %v1824 = vpop.xlane.xlu0 %1823
    %v1825 = vmul.f32 %v1821, %v80
    %v1826 = vmul.f32 %v1824, %v80
    %v1827 = vsub.f32 %v1815, %v1825
    %v1828 = vsub.f32 %v1816, %v1826
    %v1829 = vmul.f32 %v1827, %v1827
    %v1830 = vmul.f32 %v1828, %v1828
    %v1831 = vsel %vm73, %v1829, 0.0
    %1832 = vadd.xlane.f32.xlu0 %v1831
    %v1833 = vpop.xlane.xlu0 %1832
    %v1834 = vsel %vm73, %v1830, 0.0
    %1835 = vadd.xlane.f32.xlu0 %v1834
    %v1836 = vpop.xlane.xlu0 %1835
    %v1837 = vmul.f32 %v1833, %v80
    %v1838 = vmul.f32 %v1836, %v80
    %v1839 = vadd.f32 %v1837, 1e-12
    %v1840 = vadd.f32 %v1838, 1e-12
    %v1841 = vrsqrt.pop %v1839
    %v1842 = vrsqrt.pop %v1840
    %v1843 = vmul.f32 %v1827, %v1841
    %v1844 = vmul.f32 %v1828, %v1842
    %v1845 = vlaneseq
    %v1846 = vshrl.u32 %v1845, 7
    %v1847 = vsub.s32 0, %v1846
    %v1848 = vrot.slane %v1818, %v1847
    %v1849 = vmul.f32 %v1843, %v1848
    %v1850 = vmul.f32 %v1844, %v1848
    %v1851 = vlaneseq
    %v1852 = vshrl.u32 %v1851, 7
    %v1853 = vsub.s32 1, %v1852
    %v1854 = vrot.slane %v1818, %v1853
    %v1855 = vadd.f32 %v1849, %v1854
    %v1856 = vadd.f32 %v1850, %v1854
    %v1857 = vpack.c.bf16 %v1855, %v1855
    %v1858 = vpack.c.bf16 %v1856, %v1856
    %v1859 = vld [vmem:[%s13] sm:$0xf]
    %v1860 = vld [vmem:[%s13 + $0x4] sm:$0xf]
    %v1861 = vld [vmem:[%s13 + $0x8] sm:$0xf]
    %v1862 = vld [vmem:[%s13 + $0xc] sm:$0xf]
    %v1863 = vld [vmem:[%s14] sm:$0x1]
    %v1865 = vlaneseq
    %v1866 = vshrl.u32 %v1865, 7
    %v1867 = vsub.s32 0, %v1866
    %v1868 = vrot.slane %v1863, %v1867
    %v1872 = vunpack.c.l.b16 %v1857
    %v1873 = vunpack.c.l.b16 %v1858
    %v1874 = vrot.slane %v1873, 7
    %vm1875 = vcmask 1041409
    %v1876 = vsel %vm1875, %v1874, %v1872
    %v1877 = vpack.c.b16 %v1876, %v1876
    %v1882 = vunpack.c.l.b16 %v1859
    %v1883 = vunpack.c.l.b16 %v1860
    %v1884 = vunpack.c.l.b16 %v1861
    %v1885 = vunpack.c.l.b16 %v1862
    %v1886 = vpack.c.b16 %v1883, %v1882
    %v1887 = vpack.c.b16 %v1885, %v1884
    %v1891 = vsel %vm73, %v1877, 0
    %1893 = vmatprep.subr.bf16.mxu0 0
    %1894 = vmatpush1.bf16.msra.mxu0 %v1886
    %1895 = vmatprep.subr.bf16.mxu0 0
    %1896 = vmatpush1.bf16.msra.mxu0 %v1887
    %1897 = vmatprep.subr.bf16.mxu0 0
    %1898 = vmatpush1.bf16.msra.mxu0 0
    %1899 = vmatprep.subr.bf16.mxu0 0
    %1900 = vmatpush1.bf16.msra.mxu0 0
    %1901 = vmatprep.subr.bf16.mxu0 0
    %1902 = vmatpush1.bf16.msra.mxu0 0
    %1903 = vmatprep.subr.bf16.mxu0 0
    %1904 = vmatpush1.bf16.msra.mxu0 0
    %1905 = vmatprep.subr.bf16.mxu0 0
    %1906 = vmatpush1.bf16.msra.mxu0 0
    %1907 = vmatprep.subr.bf16.mxu0 0
    %1908 = vmatpush1.bf16.msra.mxu0 0
    %1909 = vmatprep.subr.bf16.mxu0 0
    %1910 = vmatpush1.bf16.msra.mxu0 0
    %1911 = vmatprep.subr.bf16.mxu0 0
    %1912 = vmatpush1.bf16.msra.mxu0 0
    %1913 = vmatprep.subr.bf16.mxu0 0
    %1914 = vmatpush1.bf16.msra.mxu0 0
    %1915 = vmatprep.subr.bf16.mxu0 0
    %1916 = vmatpush1.bf16.msra.mxu0 0
    %1917 = vmatprep.subr.bf16.mxu0 0
    %1918 = vmatpush1.bf16.msra.mxu0 0
    %1919 = vmatprep.subr.bf16.mxu0 0
    %1920 = vmatpush1.bf16.msra.mxu0 0
    %1921 = vmatprep.subr.bf16.mxu0 0
    %1922 = vmatpush1.bf16.msra.mxu0 0
    %1923 = vmatprep.subr.bf16.mxu0 0
    %1924 = vmatpush1.bf16.msra.mxu0 0
    %1925 = vmatprep.mubr.bf16.mxu0 0
    %1926 = vmatmul.mubr.bf16.gmra.mrb[0].mxu0 %v1891
    %v1927 = vpop.f32.mrb[0].mxu0
    %v1928 = vadd.f32 %v1868, %v1927
    %v1929 = vpop.f32.mrb[0].mxu0
    %v1930 = vpop.f32.mrb[0].mxu0
    %v1931 = vpop.f32.mrb[0].mxu0
    %1932 = vdwg.mxu0
    %v1933 = vtanh.pop %v1928
    %v1936 = vunpack.c.l.s4 1966171168
    %v1937 = vunpack.c.0.s8 %v1936
    %v1938 = vlaneseq
    %v1939 = vshrl.u32 %v1938, 7
    %v1940 = vsub.s32 %v1937, %v1939
    %v1941 = vrot.slane %v1933, %v1940
    %v1942 = vcombine.high %v1941, %v1941
    %v1944 = vunpack.c.l.s4 1966171168
    %v1945 = vunpack.c.0.s8 %v1944
    %v1946 = vlaneseq
    %v1947 = vshrl.u32 %v1946, 7
    %v1948 = vsub.s32 %v1945, %v1947
    %v1949 = vrot.slane %v1941, %v1948
    %v1951 = vunpack.c.l.s4 1966171168
    %v1952 = vunpack.c.0.s8 %v1951
    %v1953 = vlaneseq
    %v1954 = vshrl.u32 %v1953, 7
    %v1955 = vsub.s32 %v1952, %v1954
    %v1956 = vrot.slane %v1942, %v1955
    %vm1959 = vcmask 253952
    %1960 = vst.msk [vmem:[#allocation2] sm:$0x1] %vm1959, %v1949
    %1961 = vst.msk [vmem:[#allocation2 + $0x1] sm:$0x1] %vm1959, %v1956
    // Predicated region
    $region62: #{_lambda_.1} parent=1 // pred_check
      _
    $region63: #{_lambda_.1} parent=1 // pred_check_branch
      %1963 = sbr.rel (0) target = $region65
    $region64: #{_lambda_.1} parent=1 // pred_region
      %s1965 = ssub.s32 32, 32
      %1966 = vsyncadd [#allocation3], %s1965
      %s1967 = sshll.u32 [#allocation2], 4
      %s1968 = int_to_ptr.vmem [resolvable:$true] %s1967
      %1973 = dma.vmem_to_hbm [thread:$0]  %s1968, 32, %s15, [#allocation3], 16, 16, 1
    $region65: #{_lambda_.1} parent=1 // pred_fallthru
      _
    // Predicated region
    $region66: #{_lambda_.1} parent=1 // pred_check
      _
    $region67: #{_lambda_.1} parent=1 // pred_check_branch
      %1975 = sbr.rel (0) target = $region69
    $region68: #{_lambda_.1} parent=1 // pred_region
      %1976 = dma.done [#allocation3], 32
    $region69: #{_lambda_.1} parent=1 // pred_fallthru
      _
    %1977 = vsyncpa [#allocation3], 1

</llo_original>
